<compile_context>
chip_gen: v5e
topology: v5e:2x2
jax: 0.10.0
libtpu: 0.0.40
codegen_flags: <defaults>
</compile_context>

<pallas_src>
import functools

import jax
import jax.numpy as jnp
from jax.experimental import pallas as pl
from jax.experimental.pallas import tpu as pltpu

# ----------------------------------------------------------------------------
# Small synthetic "bert-base-uncased"-like config (shapes scaled down)
# ----------------------------------------------------------------------------
VOCAB_SIZE = 100
MAX_POS = 32
HIDDEN = 32          # transformer.config.hidden_size
NUM_HEADS = 4
HEAD_DIM = HIDDEN // NUM_HEADS
FFN_DIM = 64
NUM_LAYERS = 2
OUTPUT_DIM = 2       # len(train_data['label'].unique())
PAD_OUT = 128        # lane-dense classifier slab; sliced to OUTPUT_DIM outside
LN_EPS = 1e-12
ATTN_SCALE = 1.0 / float(HEAD_DIM) ** 0.5


# ----------------------------------------------------------------------------
# Fused forward kernel (everything in VMEM)
# ----------------------------------------------------------------------------
def _layernorm(x, g, b):
    mean = jnp.mean(x, axis=-1, keepdims=True)
    var = jnp.mean((x - mean) ** 2, axis=-1, keepdims=True)
    return (x - mean) * jax.lax.rsqrt(var + LN_EPS) * g + b


def _fused_forward_kernel(emb_ref, emb_ln_g_ref, emb_ln_b_ref,
                          wqkv_ref, bqkv_ref, wo_ref, bo_ref,
                          ln1_g_ref, ln1_b_ref,
                          wi_ref, bi_ref, wout_ref, bout_ref,
                          ln2_g_ref, ln2_b_ref,
                          fc_w_ref, fc_b_ref,
                          out_ref, *, batch, seq):
    # Embedding LayerNorm
    h = _layernorm(emb_ref[...], emb_ln_g_ref[...], emb_ln_b_ref[...])   # [B*S, H]

    for l in range(NUM_LAYERS):                     # static unroll (NUM_LAYERS=2)
        # ---- fused QKV projection: single [H, 3H] matmul ----
        qkv = jnp.dot(h, wqkv_ref[l],
                      preferred_element_type=jnp.float32) + bqkv_ref[l]   # [B*S, 3H]
        q = qkv[:, 0:HIDDEN]
        k = qkv[:, HIDDEN:2 * HIDDEN]
        v = qkv[:, 2 * HIDDEN:3 * HIDDEN]

        # ---- multi-head self-attention: pure 2-D dots, unrolled (batch, head) ----
        ctx_rows = []
        for b in range(batch):                      # static unroll (batch=2)
            r0 = b * seq
            head_ctx = []
            for hh in range(NUM_HEADS):             # static unroll (heads=4)
                c0 = hh * HEAD_DIM
                qb = q[r0:r0 + seq, c0:c0 + HEAD_DIM] * ATTN_SCALE        # [S, D]
                kb = k[r0:r0 + seq, c0:c0 + HEAD_DIM]                     # [S, D]
                vb = v[r0:r0 + seq, c0:c0 + HEAD_DIM]                     # [S, D]

                # scores = qb @ kb.T  (contract last dims; no explicit transpose)
                s = jax.lax.dot_general(
                    qb, kb, (((1,), (1,)), ((), ())),
                    preferred_element_type=jnp.float32)                   # [S, S]
                m = jnp.max(s, axis=-1, keepdims=True)
                p = jnp.exp(s - m)
                p = p * pl.reciprocal(jnp.sum(p, axis=-1, keepdims=True),
                                      approx=True)
                head_ctx.append(jnp.dot(p, vb,
                                        preferred_element_type=jnp.float32))
            ctx_rows.append(jnp.concatenate(head_ctx, axis=-1))           # [S, H]
        ctx2d = jnp.concatenate(ctx_rows, axis=0)                         # [B*S, H]

        # ---- output projection + fused residual + LayerNorm ----
        attn_out = jnp.dot(ctx2d, wo_ref[l],
                           preferred_element_type=jnp.float32) + bo_ref[l]
        h = _layernorm(h + attn_out, ln1_g_ref[l], ln1_b_ref[l])

        # ---- feed-forward + fused residual + LayerNorm ----
        inter = jnp.dot(h, wi_ref[l],
                        preferred_element_type=jnp.float32) + bi_ref[l]
        # TODO(synk): HF BERT uses exact erf GELU; tanh approximation kept here.
        inter = jax.nn.gelu(inter, approximate=True)
        ffn_out = jnp.dot(inter, wout_ref[l],
                          preferred_element_type=jnp.float32) + bout_ref[l]
        h = _layernorm(h + ffn_out, ln2_g_ref[l], ln2_b_ref[l])

    # ---- CLS pooling -> tanh -> classifier (lane-dense padded output) ----
    cls = jnp.concatenate(
        [h[b * seq: b * seq + 1, :] for b in range(batch)], axis=0)       # [B, H]
    pred = jnp.dot(jnp.tanh(cls), fc_w_ref[...],
                   preferred_element_type=jnp.float32) + fc_b_ref[...]    # [B, 128]
    out_ref[...] = pred.astype(out_ref.dtype)


def _full_spec(shape):
    zeros = (0,) * len(shape)
    return pl.BlockSpec(tuple(shape), lambda i: zeros)


# ----------------------------------------------------------------------------
# Parameter init (deterministic, synthetic, already in fused/stacked layout)
# ----------------------------------------------------------------------------
def init_params(key):
    def nrm(k, shape, scale=0.02):
        return scale * jax.random.normal(k, shape, dtype=jnp.float32)

    keys = jax.random.split(key, 8 + NUM_LAYERS)
    wqkv, bqkv, wo, bo = [], [], [], []
    ln1_g, ln1_b, wi, bi, wout, bout, ln2_g, ln2_b = [], [], [], [], [], [], [], []
    for l in range(NUM_LAYERS):
        ks = jax.random.split(keys[8 + l], 6)
        wq = nrm(ks[0], (HIDDEN, HIDDEN))
        wk = nrm(ks[1], (HIDDEN, HIDDEN))
        wv = nrm(ks[2], (HIDDEN, HIDDEN))
        wqkv.append(jnp.concatenate([wq, wk, wv], axis=1))        # [H, 3H]
        bqkv.append(jnp.zeros((1, 3 * HIDDEN), jnp.float32))
        wo.append(nrm(ks[3], (HIDDEN, HIDDEN)))
        bo.append(jnp.zeros((1, HIDDEN), jnp.float32))
        ln1_g.append(jnp.ones((1, HIDDEN), jnp.float32))
        ln1_b.append(jnp.zeros((1, HIDDEN), jnp.float32))
        wi.append(nrm(ks[4], (HIDDEN, FFN_DIM)))
        bi.append(jnp.zeros((1, FFN_DIM), jnp.float32))
        wout.append(nrm(ks[5], (FFN_DIM, HIDDEN)))
        bout.append(jnp.zeros((1, HIDDEN), jnp.float32))
        ln2_g.append(jnp.ones((1, HIDDEN), jnp.float32))
        ln2_b.append(jnp.zeros((1, HIDDEN), jnp.float32))

    fc_w = nrm(keys[3], (HIDDEN, OUTPUT_DIM))
    fc_b = jnp.zeros((OUTPUT_DIM,), jnp.float32)
    fc_w_pad = jnp.zeros((HIDDEN, PAD_OUT), jnp.float32).at[:, :OUTPUT_DIM].set(fc_w)
    fc_b_pad = jnp.zeros((1, PAD_OUT), jnp.float32).at[:, :OUTPUT_DIM].set(fc_b)

    return {
        "word_emb": nrm(keys[0], (VOCAB_SIZE, HIDDEN)),
        "pos_emb": nrm(keys[1], (MAX_POS, HIDDEN)),
        "type_emb": nrm(keys[2], (2, HIDDEN)),
        "emb_ln_g": jnp.ones((1, HIDDEN), jnp.float32),
        "emb_ln_b": jnp.zeros((1, HIDDEN), jnp.float32),
        "wqkv": jnp.stack(wqkv), "bqkv": jnp.stack(bqkv),
        "wo": jnp.stack(wo), "bo": jnp.stack(bo),
        "ln1_g": jnp.stack(ln1_g), "ln1_b": jnp.stack(ln1_b),
        "wi": jnp.stack(wi), "bi": jnp.stack(bi),
        "wout": jnp.stack(wout), "bout": jnp.stack(bout),
        "ln2_g": jnp.stack(ln2_g), "ln2_b": jnp.stack(ln2_b),
        "fc_w": fc_w_pad, "fc_b": fc_b_pad,
    }


# ----------------------------------------------------------------------------
# Forward pass (mirrors Transformer.forward: encoder -> cls -> tanh -> fc)
# ----------------------------------------------------------------------------
def transformer_forward(params, ids):
    B, S = ids.shape

    # Embedding lookup + sum is XLA glue; everything else is one fused kernel.
    emb = (params["word_emb"][ids]
           + params["pos_emb"][jnp.arange(S)][None, :, :]
           + params["type_emb"][0][None, None, :])
    emb2d = emb.reshape(B * S, HIDDEN).astype(jnp.float32)

    inputs = (
        emb2d,
        params["emb_ln_g"], params["emb_ln_b"],
        params["wqkv"], params["bqkv"],
        params["wo"], params["bo"],
        params["ln1_g"], params["ln1_b"],
        params["wi"], params["bi"],
        params["wout"], params["bout"],
        params["ln2_g"], params["ln2_b"],
        params["fc_w"], params["fc_b"],
    )

    kernel = functools.partial(_fused_forward_kernel, batch=B, seq=S)
    padded = pl.pallas_call(
        kernel,
        out_shape=jax.ShapeDtypeStruct((B, PAD_OUT), jnp.float32),
        grid=(1,),
        in_specs=[_full_spec(x.shape) for x in inputs],
        out_specs=_full_spec((B, PAD_OUT)),
        compiler_params=pltpu.CompilerParams(
            dimension_semantics=("arbitrary",),
            vmem_limit_bytes=32 * 1024 * 1024),
    )(*inputs)
    # Slice the lane-dense (B, 128) slab down to the real logits.
    return padded[:, :OUTPUT_DIM]


# ----------------------------------------------------------------------------
# Pure-JAX reference (same math) for a sanity check
# ----------------------------------------------------------------------------
def reference_forward(params, ids):
    B, S = ids.shape
    emb = (params["word_emb"][ids]
           + params["pos_emb"][jnp.arange(S)][None, :, :]
           + params["type_emb"][0][None, None, :])
    h = emb.reshape(B * S, HIDDEN)
    h = _layernorm(h, params["emb_ln_g"], params["emb_ln_b"])

    for l in range(NUM_LAYERS):
        qkv = h @ params["wqkv"][l] + params["bqkv"][l]
        q, k, v = jnp.split(qkv, 3, axis=-1)

        def heads(x):
            return x.reshape(B, S, NUM_HEADS, HEAD_DIM).transpose(0, 2, 1, 3)

        s = jnp.einsum("bhqd,bhkd->bhqk", heads(q), heads(k)) * ATTN_SCALE
        p = jax.nn.softmax(s, axis=-1)
        ctx = jnp.einsum("bhqk,bhkd->bhqd", p, heads(v))
        ctx2d = ctx.transpose(0, 2, 1, 3).reshape(B * S, HIDDEN)

        attn_out = ctx2d @ params["wo"][l] + params["bo"][l]
        h = _layernorm(h + attn_out, params["ln1_g"][l], params["ln1_b"][l])

        inter = jax.nn.gelu(h @ params["wi"][l] + params["bi"][l], approximate=True)
        ffn_out = inter @ params["wout"][l] + params["bout"][l]
        h = _layernorm(h + ffn_out, params["ln2_g"][l], params["ln2_b"][l])

    cls = h.reshape(B, S, HIDDEN)[:, 0, :]
    return (jnp.tanh(cls) @ params["fc_w"] + params["fc_b"])[:, :OUTPUT_DIM]


# TODO(synk): dropout and the attention padding-mask of the HF BERT are omitted
# (eval-mode, all tokens valid); output.attentions[-1] is computed inside the
# kernel but not returned since the original forward never uses it in the result.


if __name__ == "__main__":
    key = jax.random.PRNGKey(0)
    pkey, ikey = jax.random.split(key)
    params = init_params(pkey)

    B, S = 2, 8
    ids = jax.random.randint(ikey, (B, S), 0, VOCAB_SIZE, dtype=jnp.int32)

    pred = jax.jit(transformer_forward)(params, ids)
    jax.block_until_ready(pred)
    assert pred.shape == (B, OUTPUT_DIM)

    ref = reference_forward(params, ids)
    assert jnp.allclose(pred, ref, atol=1e-2, rtol=1e-2)
    print("KERNEL_OK")
</pallas_src>

<mosaic_0001>
module attributes {stable_mosaic.version = 11 : i64} {
  func.func @_fused_forward_kernel(%arg0: i32, %arg1: memref<16x32xf32, #tpu.memory_space<vmem>>, %arg2: memref<1x32xf32, #tpu.memory_space<vmem>>, %arg3: memref<1x32xf32, #tpu.memory_space<vmem>>, %arg4: memref<2x32x96xf32, #tpu.memory_space<vmem>>, %arg5: memref<2x1x96xf32, #tpu.memory_space<vmem>>, %arg6: memref<2x32x32xf32, #tpu.memory_space<vmem>>, %arg7: memref<2x1x32xf32, #tpu.memory_space<vmem>>, %arg8: memref<2x1x32xf32, #tpu.memory_space<vmem>>, %arg9: memref<2x1x32xf32, #tpu.memory_space<vmem>>, %arg10: memref<2x32x64xf32, #tpu.memory_space<vmem>>, %arg11: memref<2x1x64xf32, #tpu.memory_space<vmem>>, %arg12: memref<2x64x32xf32, #tpu.memory_space<vmem>>, %arg13: memref<2x1x32xf32, #tpu.memory_space<vmem>>, %arg14: memref<2x1x32xf32, #tpu.memory_space<vmem>>, %arg15: memref<2x1x32xf32, #tpu.memory_space<vmem>>, %arg16: memref<32x128xf32, #tpu.memory_space<vmem>>, %arg17: memref<1x128xf32, #tpu.memory_space<vmem>>, %arg18: memref<2x128xf32, #tpu.memory_space<vmem>>) attributes {dimension_semantics = [#tpu.dimension_semantics<arbitrary>], iteration_bounds = array<i64: 1>, scalar_prefetch = 0 : i64, scratch_operands = 0 : i64, tpu.core_type = #tpu.core_type<tc>, window_params = [{pipeline_mode = #tpu.pipeline_mode<synchronous>, transform_indices = @transform_0, window_bounds = array<i64: 16, 32>}, {pipeline_mode = #tpu.pipeline_mode<synchronous>, transform_indices = @transform_1, window_bounds = array<i64: 1, 32>}, {pipeline_mode = #tpu.pipeline_mode<synchronous>, transform_indices = @transform_2, window_bounds = array<i64: 1, 32>}, {pipeline_mode = #tpu.pipeline_mode<synchronous>, transform_indices = @transform_3, window_bounds = array<i64: 2, 32, 96>}, {pipeline_mode = #tpu.pipeline_mode<synchronous>, transform_indices = @transform_4, window_bounds = array<i64: 2, 1, 96>}, {pipeline_mode = #tpu.pipeline_mode<synchronous>, transform_indices = @transform_5, window_bounds = array<i64: 2, 32, 32>}, {pipeline_mode = #tpu.pipeline_mode<synchronous>, transform_indices = @transform_6, window_bounds = array<i64: 2, 1, 32>}, {pipeline_mode = #tpu.pipeline_mode<synchronous>, transform_indices = @transform_7, window_bounds = array<i64: 2, 1, 32>}, {pipeline_mode = #tpu.pipeline_mode<synchronous>, transform_indices = @transform_8, window_bounds = array<i64: 2, 1, 32>}, {pipeline_mode = #tpu.pipeline_mode<synchronous>, transform_indices = @transform_9, window_bounds = array<i64: 2, 32, 64>}, {pipeline_mode = #tpu.pipeline_mode<synchronous>, transform_indices = @transform_10, window_bounds = array<i64: 2, 1, 64>}, {pipeline_mode = #tpu.pipeline_mode<synchronous>, transform_indices = @transform_11, window_bounds = array<i64: 2, 64, 32>}, {pipeline_mode = #tpu.pipeline_mode<synchronous>, transform_indices = @transform_12, window_bounds = array<i64: 2, 1, 32>}, {pipeline_mode = #tpu.pipeline_mode<synchronous>, transform_indices = @transform_13, window_bounds = array<i64: 2, 1, 32>}, {pipeline_mode = #tpu.pipeline_mode<synchronous>, transform_indices = @transform_14, window_bounds = array<i64: 2, 1, 32>}, {pipeline_mode = #tpu.pipeline_mode<synchronous>, transform_indices = @transform_15, window_bounds = array<i64: 32, 128>}, {pipeline_mode = #tpu.pipeline_mode<synchronous>, transform_indices = @transform_16, window_bounds = array<i64: 1, 128>}, {pipeline_mode = #tpu.pipeline_mode<synchronous>, transform_indices = @transform_17, window_bounds = array<i64: 2, 128>}]} {
    %c0 = arith.constant 0 : index
    %c0_0 = arith.constant 0 : index
    %0 = vector.load %arg1[%c0, %c0_0] : memref<16x32xf32, #tpu.memory_space<vmem>>, vector<16x32xf32>
    %c0_1 = arith.constant 0 : index
    %c0_2 = arith.constant 0 : index
    %1 = vector.load %arg2[%c0_1, %c0_2] : memref<1x32xf32, #tpu.memory_space<vmem>>, vector<1x32xf32>
    %c0_3 = arith.constant 0 : index
    %c0_4 = arith.constant 0 : index
    %2 = vector.load %arg3[%c0_3, %c0_4] : memref<1x32xf32, #tpu.memory_space<vmem>>, vector<1x32xf32>
    %cst = arith.constant dense<0.000000e+00> : vector<16xf32>
    %3 = vector.multi_reduction <add>, %0, %cst [1] : vector<16x32xf32> to vector<16xf32>
    %4 = vector.shape_cast %3 : vector<16xf32> to vector<16x1xf32>
    %cst_5 = arith.constant 3.200000e+01 : f32
    %5 = vector.broadcast %cst_5 : f32 to vector<16x1xf32>
    %6 = arith.divf %4, %5 : vector<16x1xf32>
    %7 = vector.broadcast %6 : vector<16x1xf32> to vector<16x32xf32>
    %8 = arith.subf %0, %7 : vector<16x32xf32>
    %9 = arith.mulf %8, %8 : vector<16x32xf32>
    %cst_6 = arith.constant dense<0.000000e+00> : vector<16xf32>
    %10 = vector.multi_reduction <add>, %9, %cst_6 [1] : vector<16x32xf32> to vector<16xf32>
    %11 = vector.shape_cast %10 : vector<16xf32> to vector<16x1xf32>
    %cst_7 = arith.constant 3.200000e+01 : f32
    %12 = vector.broadcast %cst_7 : f32 to vector<16x1xf32>
    %13 = arith.divf %11, %12 : vector<16x1xf32>
    %14 = vector.broadcast %6 : vector<16x1xf32> to vector<16x32xf32>
    %15 = arith.subf %0, %14 : vector<16x32xf32>
    %cst_8 = arith.constant 9.99999996E-13 : f32
    %16 = vector.broadcast %cst_8 : f32 to vector<16x1xf32>
    %17 = arith.addf %13, %16 : vector<16x1xf32>
    %18 = math.rsqrt %17 : vector<16x1xf32>
    %19 = vector.broadcast %18 : vector<16x1xf32> to vector<16x32xf32>
    %20 = arith.mulf %15, %19 : vector<16x32xf32>
    %21 = vector.broadcast %1 : vector<1x32xf32> to vector<16x32xf32>
    %22 = arith.mulf %20, %21 : vector<16x32xf32>
    %23 = vector.broadcast %2 : vector<1x32xf32> to vector<16x32xf32>
    %24 = arith.addf %22, %23 : vector<16x32xf32>
    %c0_9 = arith.constant 0 : index
    %c0_10 = arith.constant 0 : index
    %c0_11 = arith.constant 0 : index
    %25 = vector.load %arg4[%c0_9, %c0_10, %c0_11] : memref<2x32x96xf32, #tpu.memory_space<vmem>>, vector<1x32x96xf32>
    %26 = vector.shape_cast %25 : vector<1x32x96xf32> to vector<32x96xf32>
    %cst_12 = arith.constant dense<0.000000e+00> : vector<16x96xf32>
    %27 = tpu.matmul %24, %26, %cst_12 {dimension_numbers = #tpu.dot_dimension_numbers<[1], [0], [0], [1], [0, 0, 1, 1], [], []>} : vector<16x32xf32>, vector<32x96xf32>, vector<16x96xf32> -> vector<16x96xf32>
    %c0_13 = arith.constant 0 : index
    %c0_14 = arith.constant 0 : index
    %c0_15 = arith.constant 0 : index
    %28 = vector.load %arg5[%c0_13, %c0_14, %c0_15] : memref<2x1x96xf32, #tpu.memory_space<vmem>>, vector<1x1x96xf32>
    %29 = vector.shape_cast %28 : vector<1x1x96xf32> to vector<1x96xf32>
    %30 = vector.broadcast %29 : vector<1x96xf32> to vector<16x96xf32>
    %31 = arith.addf %27, %30 : vector<16x96xf32>
    %32 = vector.extract_strided_slice %31 {offsets = [0, 0], sizes = [16, 32], strides = [1, 1]} : vector<16x96xf32> to vector<16x32xf32>
    %33 = vector.extract_strided_slice %31 {offsets = [0, 32], sizes = [16, 32], strides = [1, 1]} : vector<16x96xf32> to vector<16x32xf32>
    %34 = vector.extract_strided_slice %31 {offsets = [0, 64], sizes = [16, 32], strides = [1, 1]} : vector<16x96xf32> to vector<16x32xf32>
    %35 = vector.extract_strided_slice %32 {offsets = [0, 0], sizes = [8, 8], strides = [1, 1]} : vector<16x32xf32> to vector<8x8xf32>
    %cst_16 = arith.constant 0.353553385 : f32
    %36 = vector.broadcast %cst_16 : f32 to vector<8x8xf32>
    %37 = arith.mulf %35, %36 : vector<8x8xf32>
    %38 = vector.extract_strided_slice %33 {offsets = [0, 0], sizes = [8, 8], strides = [1, 1]} : vector<16x32xf32> to vector<8x8xf32>
    %39 = vector.extract_strided_slice %34 {offsets = [0, 0], sizes = [8, 8], strides = [1, 1]} : vector<16x32xf32> to vector<8x8xf32>
    %cst_17 = arith.constant dense<0.000000e+00> : vector<8x8xf32>
    %40 = tpu.matmul %37, %38, %cst_17 {dimension_numbers = #tpu.dot_dimension_numbers<[1], [1], [0], [0], [0, 0, 1, 0], [], []>} : vector<8x8xf32>, vector<8x8xf32>, vector<8x8xf32> -> vector<8x8xf32>
    %cst_18 = arith.constant dense<0xFF800000> : vector<8xf32>
    %41 = vector.multi_reduction <maximumf>, %40, %cst_18 [1] : vector<8x8xf32> to vector<8xf32>
    %42 = vector.shape_cast %41 : vector<8xf32> to vector<8x1xf32>
    %43 = vector.broadcast %42 : vector<8x1xf32> to vector<8x8xf32>
    %44 = arith.subf %40, %43 : vector<8x8xf32>
    %45 = math.exp %44 : vector<8x8xf32>
    %cst_19 = arith.constant dense<0.000000e+00> : vector<8xf32>
    %46 = vector.multi_reduction <add>, %45, %cst_19 [1] : vector<8x8xf32> to vector<8xf32>
    %47 = vector.shape_cast %46 : vector<8xf32> to vector<8x1xf32>
    %48 = tpu.reciprocal %47 {approx = true} : vector<8x1xf32> -> vector<8x1xf32>
    %49 = vector.broadcast %48 : vector<8x1xf32> to vector<8x8xf32>
    %50 = arith.mulf %45, %49 : vector<8x8xf32>
    %cst_20 = arith.constant dense<0.000000e+00> : vector<8x8xf32>
    %51 = tpu.matmul %50, %39, %cst_20 {dimension_numbers = #tpu.dot_dimension_numbers<[1], [0], [0], [1], [0, 0, 1, 1], [], []>} : vector<8x8xf32>, vector<8x8xf32>, vector<8x8xf32> -> vector<8x8xf32>
    %52 = vector.extract_strided_slice %32 {offsets = [0, 8], sizes = [8, 8], strides = [1, 1]} : vector<16x32xf32> to vector<8x8xf32>
    %cst_21 = arith.constant 0.353553385 : f32
    %53 = vector.broadcast %cst_21 : f32 to vector<8x8xf32>
    %54 = arith.mulf %52, %53 : vector<8x8xf32>
    %55 = vector.extract_strided_slice %33 {offsets = [0, 8], sizes = [8, 8], strides = [1, 1]} : vector<16x32xf32> to vector<8x8xf32>
    %56 = vector.extract_strided_slice %34 {offsets = [0, 8], sizes = [8, 8], strides = [1, 1]} : vector<16x32xf32> to vector<8x8xf32>
    %cst_22 = arith.constant dense<0.000000e+00> : vector<8x8xf32>
    %57 = tpu.matmul %54, %55, %cst_22 {dimension_numbers = #tpu.dot_dimension_numbers<[1], [1], [0], [0], [0, 0, 1, 0], [], []>} : vector<8x8xf32>, vector<8x8xf32>, vector<8x8xf32> -> vector<8x8xf32>
    %cst_23 = arith.constant dense<0xFF800000> : vector<8xf32>
    %58 = vector.multi_reduction <maximumf>, %57, %cst_23 [1] : vector<8x8xf32> to vector<8xf32>
    %59 = vector.shape_cast %58 : vector<8xf32> to vector<8x1xf32>
    %60 = vector.broadcast %59 : vector<8x1xf32> to vector<8x8xf32>
    %61 = arith.subf %57, %60 : vector<8x8xf32>
    %62 = math.exp %61 : vector<8x8xf32>
    %cst_24 = arith.constant dense<0.000000e+00> : vector<8xf32>
    %63 = vector.multi_reduction <add>, %62, %cst_24 [1] : vector<8x8xf32> to vector<8xf32>
    %64 = vector.shape_cast %63 : vector<8xf32> to vector<8x1xf32>
    %65 = tpu.reciprocal %64 {approx = true} : vector<8x1xf32> -> vector<8x1xf32>
    %66 = vector.broadcast %65 : vector<8x1xf32> to vector<8x8xf32>
    %67 = arith.mulf %62, %66 : vector<8x8xf32>
    %cst_25 = arith.constant dense<0.000000e+00> : vector<8x8xf32>
    %68 = tpu.matmul %67, %56, %cst_25 {dimension_numbers = #tpu.dot_dimension_numbers<[1], [0], [0], [1], [0, 0, 1, 1], [], []>} : vector<8x8xf32>, vector<8x8xf32>, vector<8x8xf32> -> vector<8x8xf32>
    %69 = vector.extract_strided_slice %32 {offsets = [0, 16], sizes = [8, 8], strides = [1, 1]} : vector<16x32xf32> to vector<8x8xf32>
    %cst_26 = arith.constant 0.353553385 : f32
    %70 = vector.broadcast %cst_26 : f32 to vector<8x8xf32>
    %71 = arith.mulf %69, %70 : vector<8x8xf32>
    %72 = vector.extract_strided_slice %33 {offsets = [0, 16], sizes = [8, 8], strides = [1, 1]} : vector<16x32xf32> to vector<8x8xf32>
    %73 = vector.extract_strided_slice %34 {offsets = [0, 16], sizes = [8, 8], strides = [1, 1]} : vector<16x32xf32> to vector<8x8xf32>
    %cst_27 = arith.constant dense<0.000000e+00> : vector<8x8xf32>
    %74 = tpu.matmul %71, %72, %cst_27 {dimension_numbers = #tpu.dot_dimension_numbers<[1], [1], [0], [0], [0, 0, 1, 0], [], []>} : vector<8x8xf32>, vector<8x8xf32>, vector<8x8xf32> -> vector<8x8xf32>
    %cst_28 = arith.constant dense<0xFF800000> : vector<8xf32>
    %75 = vector.multi_reduction <maximumf>, %74, %cst_28 [1] : vector<8x8xf32> to vector<8xf32>
    %76 = vector.shape_cast %75 : vector<8xf32> to vector<8x1xf32>
    %77 = vector.broadcast %76 : vector<8x1xf32> to vector<8x8xf32>
    %78 = arith.subf %74, %77 : vector<8x8xf32>
    %79 = math.exp %78 : vector<8x8xf32>
    %cst_29 = arith.constant dense<0.000000e+00> : vector<8xf32>
    %80 = vector.multi_reduction <add>, %79, %cst_29 [1] : vector<8x8xf32> to vector<8xf32>
    %81 = vector.shape_cast %80 : vector<8xf32> to vector<8x1xf32>
    %82 = tpu.reciprocal %81 {approx = true} : vector<8x1xf32> -> vector<8x1xf32>
    %83 = vector.broadcast %82 : vector<8x1xf32> to vector<8x8xf32>
    %84 = arith.mulf %79, %83 : vector<8x8xf32>
    %cst_30 = arith.constant dense<0.000000e+00> : vector<8x8xf32>
    %85 = tpu.matmul %84, %73, %cst_30 {dimension_numbers = #tpu.dot_dimension_numbers<[1], [0], [0], [1], [0, 0, 1, 1], [], []>} : vector<8x8xf32>, vector<8x8xf32>, vector<8x8xf32> -> vector<8x8xf32>
    %86 = vector.extract_strided_slice %32 {offsets = [0, 24], sizes = [8, 8], strides = [1, 1]} : vector<16x32xf32> to vector<8x8xf32>
    %cst_31 = arith.constant 0.353553385 : f32
    %87 = vector.broadcast %cst_31 : f32 to vector<8x8xf32>
    %88 = arith.mulf %86, %87 : vector<8x8xf32>
    %89 = vector.extract_strided_slice %33 {offsets = [0, 24], sizes = [8, 8], strides = [1, 1]} : vector<16x32xf32> to vector<8x8xf32>
    %90 = vector.extract_strided_slice %34 {offsets = [0, 24], sizes = [8, 8], strides = [1, 1]} : vector<16x32xf32> to vector<8x8xf32>
    %cst_32 = arith.constant dense<0.000000e+00> : vector<8x8xf32>
    %91 = tpu.matmul %88, %89, %cst_32 {dimension_numbers = #tpu.dot_dimension_numbers<[1], [1], [0], [0], [0, 0, 1, 0], [], []>} : vector<8x8xf32>, vector<8x8xf32>, vector<8x8xf32> -> vector<8x8xf32>
    %cst_33 = arith.constant dense<0xFF800000> : vector<8xf32>
    %92 = vector.multi_reduction <maximumf>, %91, %cst_33 [1] : vector<8x8xf32> to vector<8xf32>
    %93 = vector.shape_cast %92 : vector<8xf32> to vector<8x1xf32>
    %94 = vector.broadcast %93 : vector<8x1xf32> to vector<8x8xf32>
    %95 = arith.subf %91, %94 : vector<8x8xf32>
    %96 = math.exp %95 : vector<8x8xf32>
    %cst_34 = arith.constant dense<0.000000e+00> : vector<8xf32>
    %97 = vector.multi_reduction <add>, %96, %cst_34 [1] : vector<8x8xf32> to vector<8xf32>
    %98 = vector.shape_cast %97 : vector<8xf32> to vector<8x1xf32>
    %99 = tpu.reciprocal %98 {approx = true} : vector<8x1xf32> -> vector<8x1xf32>
    %100 = vector.broadcast %99 : vector<8x1xf32> to vector<8x8xf32>
    %101 = arith.mulf %96, %100 : vector<8x8xf32>
    %cst_35 = arith.constant dense<0.000000e+00> : vector<8x8xf32>
    %102 = tpu.matmul %101, %90, %cst_35 {dimension_numbers = #tpu.dot_dimension_numbers<[1], [0], [0], [1], [0, 0, 1, 1], [], []>} : vector<8x8xf32>, vector<8x8xf32>, vector<8x8xf32> -> vector<8x8xf32>
    %103 = tpu.concatenate %51, %68, %85, %102 in 1 : vector<8x8xf32>, vector<8x8xf32>, vector<8x8xf32>, vector<8x8xf32> -> vector<8x32xf32>
    %104 = vector.extract_strided_slice %32 {offsets = [8, 0], sizes = [8, 8], strides = [1, 1]} : vector<16x32xf32> to vector<8x8xf32>
    %cst_36 = arith.constant 0.353553385 : f32
    %105 = vector.broadcast %cst_36 : f32 to vector<8x8xf32>
    %106 = arith.mulf %104, %105 : vector<8x8xf32>
    %107 = vector.extract_strided_slice %33 {offsets = [8, 0], sizes = [8, 8], strides = [1, 1]} : vector<16x32xf32> to vector<8x8xf32>
    %108 = vector.extract_strided_slice %34 {offsets = [8, 0], sizes = [8, 8], strides = [1, 1]} : vector<16x32xf32> to vector<8x8xf32>
    %cst_37 = arith.constant dense<0.000000e+00> : vector<8x8xf32>
    %109 = tpu.matmul %106, %107, %cst_37 {dimension_numbers = #tpu.dot_dimension_numbers<[1], [1], [0], [0], [0, 0, 1, 0], [], []>} : vector<8x8xf32>, vector<8x8xf32>, vector<8x8xf32> -> vector<8x8xf32>
    %cst_38 = arith.constant dense<0xFF800000> : vector<8xf32>
    %110 = vector.multi_reduction <maximumf>, %109, %cst_38 [1] : vector<8x8xf32> to vector<8xf32>
    %111 = vector.shape_cast %110 : vector<8xf32> to vector<8x1xf32>
    %112 = vector.broadcast %111 : vector<8x1xf32> to vector<8x8xf32>
    %113 = arith.subf %109, %112 : vector<8x8xf32>
    %114 = math.exp %113 : vector<8x8xf32>
    %cst_39 = arith.constant dense<0.000000e+00> : vector<8xf32>
    %115 = vector.multi_reduction <add>, %114, %cst_39 [1] : vector<8x8xf32> to vector<8xf32>
    %116 = vector.shape_cast %115 : vector<8xf32> to vector<8x1xf32>
    %117 = tpu.reciprocal %116 {approx = true} : vector<8x1xf32> -> vector<8x1xf32>
    %118 = vector.broadcast %117 : vector<8x1xf32> to vector<8x8xf32>
    %119 = arith.mulf %114, %118 : vector<8x8xf32>
    %cst_40 = arith.constant dense<0.000000e+00> : vector<8x8xf32>
    %120 = tpu.matmul %119, %108, %cst_40 {dimension_numbers = #tpu.dot_dimension_numbers<[1], [0], [0], [1], [0, 0, 1, 1], [], []>} : vector<8x8xf32>, vector<8x8xf32>, vector<8x8xf32> -> vector<8x8xf32>
    %121 = vector.extract_strided_slice %32 {offsets = [8, 8], sizes = [8, 8], strides = [1, 1]} : vector<16x32xf32> to vector<8x8xf32>
    %cst_41 = arith.constant 0.353553385 : f32
    %122 = vector.broadcast %cst_41 : f32 to vector<8x8xf32>
    %123 = arith.mulf %121, %122 : vector<8x8xf32>
    %124 = vector.extract_strided_slice %33 {offsets = [8, 8], sizes = [8, 8], strides = [1, 1]} : vector<16x32xf32> to vector<8x8xf32>
    %125 = vector.extract_strided_slice %34 {offsets = [8, 8], sizes = [8, 8], strides = [1, 1]} : vector<16x32xf32> to vector<8x8xf32>
    %cst_42 = arith.constant dense<0.000000e+00> : vector<8x8xf32>
    %126 = tpu.matmul %123, %124, %cst_42 {dimension_numbers = #tpu.dot_dimension_numbers<[1], [1], [0], [0], [0, 0, 1, 0], [], []>} : vector<8x8xf32>, vector<8x8xf32>, vector<8x8xf32> -> vector<8x8xf32>
    %cst_43 = arith.constant dense<0xFF800000> : vector<8xf32>
    %127 = vector.multi_reduction <maximumf>, %126, %cst_43 [1] : vector<8x8xf32> to vector<8xf32>
    %128 = vector.shape_cast %127 : vector<8xf32> to vector<8x1xf32>
    %129 = vector.broadcast %128 : vector<8x1xf32> to vector<8x8xf32>
    %130 = arith.subf %126, %129 : vector<8x8xf32>
    %131 = math.exp %130 : vector<8x8xf32>
    %cst_44 = arith.constant dense<0.000000e+00> : vector<8xf32>
    %132 = vector.multi_reduction <add>, %131, %cst_44 [1] : vector<8x8xf32> to vector<8xf32>
    %133 = vector.shape_cast %132 : vector<8xf32> to vector<8x1xf32>
    %134 = tpu.reciprocal %133 {approx = true} : vector<8x1xf32> -> vector<8x1xf32>
    %135 = vector.broadcast %134 : vector<8x1xf32> to vector<8x8xf32>
    %136 = arith.mulf %131, %135 : vector<8x8xf32>
    %cst_45 = arith.constant dense<0.000000e+00> : vector<8x8xf32>
    %137 = tpu.matmul %136, %125, %cst_45 {dimension_numbers = #tpu.dot_dimension_numbers<[1], [0], [0], [1], [0, 0, 1, 1], [], []>} : vector<8x8xf32>, vector<8x8xf32>, vector<8x8xf32> -> vector<8x8xf32>
    %138 = vector.extract_strided_slice %32 {offsets = [8, 16], sizes = [8, 8], strides = [1, 1]} : vector<16x32xf32> to vector<8x8xf32>
    %cst_46 = arith.constant 0.353553385 : f32
    %139 = vector.broadcast %cst_46 : f32 to vector<8x8xf32>
    %140 = arith.mulf %138, %139 : vector<8x8xf32>
    %141 = vector.extract_strided_slice %33 {offsets = [8, 16], sizes = [8, 8], strides = [1, 1]} : vector<16x32xf32> to vector<8x8xf32>
    %142 = vector.extract_strided_slice %34 {offsets = [8, 16], sizes = [8, 8], strides = [1, 1]} : vector<16x32xf32> to vector<8x8xf32>
    %cst_47 = arith.constant dense<0.000000e+00> : vector<8x8xf32>
    %143 = tpu.matmul %140, %141, %cst_47 {dimension_numbers = #tpu.dot_dimension_numbers<[1], [1], [0], [0], [0, 0, 1, 0], [], []>} : vector<8x8xf32>, vector<8x8xf32>, vector<8x8xf32> -> vector<8x8xf32>
    %cst_48 = arith.constant dense<0xFF800000> : vector<8xf32>
    %144 = vector.multi_reduction <maximumf>, %143, %cst_48 [1] : vector<8x8xf32> to vector<8xf32>
    %145 = vector.shape_cast %144 : vector<8xf32> to vector<8x1xf32>
    %146 = vector.broadcast %145 : vector<8x1xf32> to vector<8x8xf32>
    %147 = arith.subf %143, %146 : vector<8x8xf32>
    %148 = math.exp %147 : vector<8x8xf32>
    %cst_49 = arith.constant dense<0.000000e+00> : vector<8xf32>
    %149 = vector.multi_reduction <add>, %148, %cst_49 [1] : vector<8x8xf32> to vector<8xf32>
    %150 = vector.shape_cast %149 : vector<8xf32> to vector<8x1xf32>
    %151 = tpu.reciprocal %150 {approx = true} : vector<8x1xf32> -> vector<8x1xf32>
    %152 = vector.broadcast %151 : vector<8x1xf32> to vector<8x8xf32>
    %153 = arith.mulf %148, %152 : vector<8x8xf32>
    %cst_50 = arith.constant dense<0.000000e+00> : vector<8x8xf32>
    %154 = tpu.matmul %153, %142, %cst_50 {dimension_numbers = #tpu.dot_dimension_numbers<[1], [0], [0], [1], [0, 0, 1, 1], [], []>} : vector<8x8xf32>, vector<8x8xf32>, vector<8x8xf32> -> vector<8x8xf32>
    %155 = vector.extract_strided_slice %32 {offsets = [8, 24], sizes = [8, 8], strides = [1, 1]} : vector<16x32xf32> to vector<8x8xf32>
    %cst_51 = arith.constant 0.353553385 : f32
    %156 = vector.broadcast %cst_51 : f32 to vector<8x8xf32>
    %157 = arith.mulf %155, %156 : vector<8x8xf32>
    %158 = vector.extract_strided_slice %33 {offsets = [8, 24], sizes = [8, 8], strides = [1, 1]} : vector<16x32xf32> to vector<8x8xf32>
    %159 = vector.extract_strided_slice %34 {offsets = [8, 24], sizes = [8, 8], strides = [1, 1]} : vector<16x32xf32> to vector<8x8xf32>
    %cst_52 = arith.constant dense<0.000000e+00> : vector<8x8xf32>
    %160 = tpu.matmul %157, %158, %cst_52 {dimension_numbers = #tpu.dot_dimension_numbers<[1], [1], [0], [0], [0, 0, 1, 0], [], []>} : vector<8x8xf32>, vector<8x8xf32>, vector<8x8xf32> -> vector<8x8xf32>
    %cst_53 = arith.constant dense<0xFF800000> : vector<8xf32>
    %161 = vector.multi_reduction <maximumf>, %160, %cst_53 [1] : vector<8x8xf32> to vector<8xf32>
    %162 = vector.shape_cast %161 : vector<8xf32> to vector<8x1xf32>
    %163 = vector.broadcast %162 : vector<8x1xf32> to vector<8x8xf32>
    %164 = arith.subf %160, %163 : vector<8x8xf32>
    %165 = math.exp %164 : vector<8x8xf32>
    %cst_54 = arith.constant dense<0.000000e+00> : vector<8xf32>
    %166 = vector.multi_reduction <add>, %165, %cst_54 [1] : vector<8x8xf32> to vector<8xf32>
    %167 = vector.shape_cast %166 : vector<8xf32> to vector<8x1xf32>
    %168 = tpu.reciprocal %167 {approx = true} : vector<8x1xf32> -> vector<8x1xf32>
    %169 = vector.broadcast %168 : vector<8x1xf32> to vector<8x8xf32>
    %170 = arith.mulf %165, %169 : vector<8x8xf32>
    %cst_55 = arith.constant dense<0.000000e+00> : vector<8x8xf32>
    %171 = tpu.matmul %170, %159, %cst_55 {dimension_numbers = #tpu.dot_dimension_numbers<[1], [0], [0], [1], [0, 0, 1, 1], [], []>} : vector<8x8xf32>, vector<8x8xf32>, vector<8x8xf32> -> vector<8x8xf32>
    %172 = tpu.concatenate %120, %137, %154, %171 in 1 : vector<8x8xf32>, vector<8x8xf32>, vector<8x8xf32>, vector<8x8xf32> -> vector<8x32xf32>
    %173 = tpu.concatenate %103, %172 in 0 : vector<8x32xf32>, vector<8x32xf32> -> vector<16x32xf32>
    %c0_56 = arith.constant 0 : index
    %c0_57 = arith.constant 0 : index
    %c0_58 = arith.constant 0 : index
    %174 = vector.load %arg6[%c0_56, %c0_57, %c0_58] : memref<2x32x32xf32, #tpu.memory_space<vmem>>, vector<1x32x32xf32>
    %175 = vector.shape_cast %174 : vector<1x32x32xf32> to vector<32x32xf32>
    %cst_59 = arith.constant dense<0.000000e+00> : vector<16x32xf32>
    %176 = tpu.matmul %173, %175, %cst_59 {dimension_numbers = #tpu.dot_dimension_numbers<[1], [0], [0], [1], [0, 0, 1, 1], [], []>} : vector<16x32xf32>, vector<32x32xf32>, vector<16x32xf32> -> vector<16x32xf32>
    %c0_60 = arith.constant 0 : index
    %c0_61 = arith.constant 0 : index
    %c0_62 = arith.constant 0 : index
    %177 = vector.load %arg7[%c0_60, %c0_61, %c0_62] : memref<2x1x32xf32, #tpu.memory_space<vmem>>, vector<1x1x32xf32>
    %178 = vector.shape_cast %177 : vector<1x1x32xf32> to vector<1x32xf32>
    %179 = vector.broadcast %178 : vector<1x32xf32> to vector<16x32xf32>
    %180 = arith.addf %176, %179 : vector<16x32xf32>
    %181 = arith.addf %24, %180 : vector<16x32xf32>
    %c0_63 = arith.constant 0 : index
    %c0_64 = arith.constant 0 : index
    %c0_65 = arith.constant 0 : index
    %182 = vector.load %arg8[%c0_63, %c0_64, %c0_65] : memref<2x1x32xf32, #tpu.memory_space<vmem>>, vector<1x1x32xf32>
    %183 = vector.shape_cast %182 : vector<1x1x32xf32> to vector<1x32xf32>
    %c0_66 = arith.constant 0 : index
    %c0_67 = arith.constant 0 : index
    %c0_68 = arith.constant 0 : index
    %184 = vector.load %arg9[%c0_66, %c0_67, %c0_68] : memref<2x1x32xf32, #tpu.memory_space<vmem>>, vector<1x1x32xf32>
    %185 = vector.shape_cast %184 : vector<1x1x32xf32> to vector<1x32xf32>
    %cst_69 = arith.constant dense<0.000000e+00> : vector<16xf32>
    %186 = vector.multi_reduction <add>, %181, %cst_69 [1] : vector<16x32xf32> to vector<16xf32>
    %187 = vector.shape_cast %186 : vector<16xf32> to vector<16x1xf32>
    %cst_70 = arith.constant 3.200000e+01 : f32
    %188 = vector.broadcast %cst_70 : f32 to vector<16x1xf32>
    %189 = arith.divf %187, %188 : vector<16x1xf32>
    %190 = vector.broadcast %189 : vector<16x1xf32> to vector<16x32xf32>
    %191 = arith.subf %181, %190 : vector<16x32xf32>
    %192 = arith.mulf %191, %191 : vector<16x32xf32>
    %cst_71 = arith.constant dense<0.000000e+00> : vector<16xf32>
    %193 = vector.multi_reduction <add>, %192, %cst_71 [1] : vector<16x32xf32> to vector<16xf32>
    %194 = vector.shape_cast %193 : vector<16xf32> to vector<16x1xf32>
    %cst_72 = arith.constant 3.200000e+01 : f32
    %195 = vector.broadcast %cst_72 : f32 to vector<16x1xf32>
    %196 = arith.divf %194, %195 : vector<16x1xf32>
    %197 = vector.broadcast %189 : vector<16x1xf32> to vector<16x32xf32>
    %198 = arith.subf %181, %197 : vector<16x32xf32>
    %cst_73 = arith.constant 9.99999996E-13 : f32
    %199 = vector.broadcast %cst_73 : f32 to vector<16x1xf32>
    %200 = arith.addf %196, %199 : vector<16x1xf32>
    %201 = math.rsqrt %200 : vector<16x1xf32>
    %202 = vector.broadcast %201 : vector<16x1xf32> to vector<16x32xf32>
    %203 = arith.mulf %198, %202 : vector<16x32xf32>
    %204 = vector.broadcast %183 : vector<1x32xf32> to vector<16x32xf32>
    %205 = arith.mulf %203, %204 : vector<16x32xf32>
    %206 = vector.broadcast %185 : vector<1x32xf32> to vector<16x32xf32>
    %207 = arith.addf %205, %206 : vector<16x32xf32>
    %c0_74 = arith.constant 0 : index
    %c0_75 = arith.constant 0 : index
    %c0_76 = arith.constant 0 : index
    %208 = vector.load %arg10[%c0_74, %c0_75, %c0_76] : memref<2x32x64xf32, #tpu.memory_space<vmem>>, vector<1x32x64xf32>
    %209 = vector.shape_cast %208 : vector<1x32x64xf32> to vector<32x64xf32>
    %cst_77 = arith.constant dense<0.000000e+00> : vector<16x64xf32>
    %210 = tpu.matmul %207, %209, %cst_77 {dimension_numbers = #tpu.dot_dimension_numbers<[1], [0], [0], [1], [0, 0, 1, 1], [], []>} : vector<16x32xf32>, vector<32x64xf32>, vector<16x64xf32> -> vector<16x64xf32>
    %c0_78 = arith.constant 0 : index
    %c0_79 = arith.constant 0 : index
    %c0_80 = arith.constant 0 : index
    %211 = vector.load %arg11[%c0_78, %c0_79, %c0_80] : memref<2x1x64xf32, #tpu.memory_space<vmem>>, vector<1x1x64xf32>
    %212 = vector.shape_cast %211 : vector<1x1x64xf32> to vector<1x64xf32>
    %213 = vector.broadcast %212 : vector<1x64xf32> to vector<16x64xf32>
    %214 = arith.addf %210, %213 : vector<16x64xf32>
    %215 = arith.mulf %214, %214 : vector<16x64xf32>
    %216 = arith.mulf %214, %215 : vector<16x64xf32>
    %cst_81 = arith.constant 4.471500e-02 : f32
    %217 = vector.broadcast %cst_81 : f32 to vector<16x64xf32>
    %218 = arith.mulf %217, %216 : vector<16x64xf32>
    %219 = arith.addf %214, %218 : vector<16x64xf32>
    %cst_82 = arith.constant 0.797884583 : f32
    %220 = vector.broadcast %cst_82 : f32 to vector<16x64xf32>
    %221 = arith.mulf %220, %219 : vector<16x64xf32>
    %222 = math.tanh %221 : vector<16x64xf32>
    %cst_83 = arith.constant 1.000000e+00 : f32
    %223 = vector.broadcast %cst_83 : f32 to vector<16x64xf32>
    %224 = arith.addf %223, %222 : vector<16x64xf32>
    %cst_84 = arith.constant 5.000000e-01 : f32
    %225 = vector.broadcast %cst_84 : f32 to vector<16x64xf32>
    %226 = arith.mulf %225, %224 : vector<16x64xf32>
    %227 = arith.mulf %214, %226 : vector<16x64xf32>
    %c0_85 = arith.constant 0 : index
    %c0_86 = arith.constant 0 : index
    %c0_87 = arith.constant 0 : index
    %228 = vector.load %arg12[%c0_85, %c0_86, %c0_87] : memref<2x64x32xf32, #tpu.memory_space<vmem>>, vector<1x64x32xf32>
    %229 = vector.shape_cast %228 : vector<1x64x32xf32> to vector<64x32xf32>
    %cst_88 = arith.constant dense<0.000000e+00> : vector<16x32xf32>
    %230 = tpu.matmul %227, %229, %cst_88 {dimension_numbers = #tpu.dot_dimension_numbers<[1], [0], [0], [1], [0, 0, 1, 1], [], []>} : vector<16x64xf32>, vector<64x32xf32>, vector<16x32xf32> -> vector<16x32xf32>
    %c0_89 = arith.constant 0 : index
    %c0_90 = arith.constant 0 : index
    %c0_91 = arith.constant 0 : index
    %231 = vector.load %arg13[%c0_89, %c0_90, %c0_91] : memref<2x1x32xf32, #tpu.memory_space<vmem>>, vector<1x1x32xf32>
    %232 = vector.shape_cast %231 : vector<1x1x32xf32> to vector<1x32xf32>
    %233 = vector.broadcast %232 : vector<1x32xf32> to vector<16x32xf32>
    %234 = arith.addf %230, %233 : vector<16x32xf32>
    %235 = arith.addf %207, %234 : vector<16x32xf32>
    %c0_92 = arith.constant 0 : index
    %c0_93 = arith.constant 0 : index
    %c0_94 = arith.constant 0 : index
    %236 = vector.load %arg14[%c0_92, %c0_93, %c0_94] : memref<2x1x32xf32, #tpu.memory_space<vmem>>, vector<1x1x32xf32>
    %237 = vector.shape_cast %236 : vector<1x1x32xf32> to vector<1x32xf32>
    %c0_95 = arith.constant 0 : index
    %c0_96 = arith.constant 0 : index
    %c0_97 = arith.constant 0 : index
    %238 = vector.load %arg15[%c0_95, %c0_96, %c0_97] : memref<2x1x32xf32, #tpu.memory_space<vmem>>, vector<1x1x32xf32>
    %239 = vector.shape_cast %238 : vector<1x1x32xf32> to vector<1x32xf32>
    %cst_98 = arith.constant dense<0.000000e+00> : vector<16xf32>
    %240 = vector.multi_reduction <add>, %235, %cst_98 [1] : vector<16x32xf32> to vector<16xf32>
    %241 = vector.shape_cast %240 : vector<16xf32> to vector<16x1xf32>
    %cst_99 = arith.constant 3.200000e+01 : f32
    %242 = vector.broadcast %cst_99 : f32 to vector<16x1xf32>
    %243 = arith.divf %241, %242 : vector<16x1xf32>
    %244 = vector.broadcast %243 : vector<16x1xf32> to vector<16x32xf32>
    %245 = arith.subf %235, %244 : vector<16x32xf32>
    %246 = arith.mulf %245, %245 : vector<16x32xf32>
    %cst_100 = arith.constant dense<0.000000e+00> : vector<16xf32>
    %247 = vector.multi_reduction <add>, %246, %cst_100 [1] : vector<16x32xf32> to vector<16xf32>
    %248 = vector.shape_cast %247 : vector<16xf32> to vector<16x1xf32>
    %cst_101 = arith.constant 3.200000e+01 : f32
    %249 = vector.broadcast %cst_101 : f32 to vector<16x1xf32>
    %250 = arith.divf %248, %249 : vector<16x1xf32>
    %251 = vector.broadcast %243 : vector<16x1xf32> to vector<16x32xf32>
    %252 = arith.subf %235, %251 : vector<16x32xf32>
    %cst_102 = arith.constant 9.99999996E-13 : f32
    %253 = vector.broadcast %cst_102 : f32 to vector<16x1xf32>
    %254 = arith.addf %250, %253 : vector<16x1xf32>
    %255 = math.rsqrt %254 : vector<16x1xf32>
    %256 = vector.broadcast %255 : vector<16x1xf32> to vector<16x32xf32>
    %257 = arith.mulf %252, %256 : vector<16x32xf32>
    %258 = vector.broadcast %237 : vector<1x32xf32> to vector<16x32xf32>
    %259 = arith.mulf %257, %258 : vector<16x32xf32>
    %260 = vector.broadcast %239 : vector<1x32xf32> to vector<16x32xf32>
    %261 = arith.addf %259, %260 : vector<16x32xf32>
    %c1 = arith.constant 1 : index
    %c0_103 = arith.constant 0 : index
    %c0_104 = arith.constant 0 : index
    %262 = vector.load %arg4[%c1, %c0_103, %c0_104] : memref<2x32x96xf32, #tpu.memory_space<vmem>>, vector<1x32x96xf32>
    %263 = vector.shape_cast %262 : vector<1x32x96xf32> to vector<32x96xf32>
    %cst_105 = arith.constant dense<0.000000e+00> : vector<16x96xf32>
    %264 = tpu.matmul %261, %263, %cst_105 {dimension_numbers = #tpu.dot_dimension_numbers<[1], [0], [0], [1], [0, 0, 1, 1], [], []>} : vector<16x32xf32>, vector<32x96xf32>, vector<16x96xf32> -> vector<16x96xf32>
    %c1_106 = arith.constant 1 : index
    %c0_107 = arith.constant 0 : index
    %c0_108 = arith.constant 0 : index
    %265 = vector.load %arg5[%c1_106, %c0_107, %c0_108] : memref<2x1x96xf32, #tpu.memory_space<vmem>>, vector<1x1x96xf32>
    %266 = vector.shape_cast %265 : vector<1x1x96xf32> to vector<1x96xf32>
    %267 = vector.broadcast %266 : vector<1x96xf32> to vector<16x96xf32>
    %268 = arith.addf %264, %267 : vector<16x96xf32>
    %269 = vector.extract_strided_slice %268 {offsets = [0, 0], sizes = [16, 32], strides = [1, 1]} : vector<16x96xf32> to vector<16x32xf32>
    %270 = vector.extract_strided_slice %268 {offsets = [0, 32], sizes = [16, 32], strides = [1, 1]} : vector<16x96xf32> to vector<16x32xf32>
    %271 = vector.extract_strided_slice %268 {offsets = [0, 64], sizes = [16, 32], strides = [1, 1]} : vector<16x96xf32> to vector<16x32xf32>
    %272 = vector.extract_strided_slice %269 {offsets = [0, 0], sizes = [8, 8], strides = [1, 1]} : vector<16x32xf32> to vector<8x8xf32>
    %cst_109 = arith.constant 0.353553385 : f32
    %273 = vector.broadcast %cst_109 : f32 to vector<8x8xf32>
    %274 = arith.mulf %272, %273 : vector<8x8xf32>
    %275 = vector.extract_strided_slice %270 {offsets = [0, 0], sizes = [8, 8], strides = [1, 1]} : vector<16x32xf32> to vector<8x8xf32>
    %276 = vector.extract_strided_slice %271 {offsets = [0, 0], sizes = [8, 8], strides = [1, 1]} : vector<16x32xf32> to vector<8x8xf32>
    %cst_110 = arith.constant dense<0.000000e+00> : vector<8x8xf32>
    %277 = tpu.matmul %274, %275, %cst_110 {dimension_numbers = #tpu.dot_dimension_numbers<[1], [1], [0], [0], [0, 0, 1, 0], [], []>} : vector<8x8xf32>, vector<8x8xf32>, vector<8x8xf32> -> vector<8x8xf32>
    %cst_111 = arith.constant dense<0xFF800000> : vector<8xf32>
    %278 = vector.multi_reduction <maximumf>, %277, %cst_111 [1] : vector<8x8xf32> to vector<8xf32>
    %279 = vector.shape_cast %278 : vector<8xf32> to vector<8x1xf32>
    %280 = vector.broadcast %279 : vector<8x1xf32> to vector<8x8xf32>
    %281 = arith.subf %277, %280 : vector<8x8xf32>
    %282 = math.exp %281 : vector<8x8xf32>
    %cst_112 = arith.constant dense<0.000000e+00> : vector<8xf32>
    %283 = vector.multi_reduction <add>, %282, %cst_112 [1] : vector<8x8xf32> to vector<8xf32>
    %284 = vector.shape_cast %283 : vector<8xf32> to vector<8x1xf32>
    %285 = tpu.reciprocal %284 {approx = true} : vector<8x1xf32> -> vector<8x1xf32>
    %286 = vector.broadcast %285 : vector<8x1xf32> to vector<8x8xf32>
    %287 = arith.mulf %282, %286 : vector<8x8xf32>
    %cst_113 = arith.constant dense<0.000000e+00> : vector<8x8xf32>
    %288 = tpu.matmul %287, %276, %cst_113 {dimension_numbers = #tpu.dot_dimension_numbers<[1], [0], [0], [1], [0, 0, 1, 1], [], []>} : vector<8x8xf32>, vector<8x8xf32>, vector<8x8xf32> -> vector<8x8xf32>
    %289 = vector.extract_strided_slice %269 {offsets = [0, 8], sizes = [8, 8], strides = [1, 1]} : vector<16x32xf32> to vector<8x8xf32>
    %cst_114 = arith.constant 0.353553385 : f32
    %290 = vector.broadcast %cst_114 : f32 to vector<8x8xf32>
    %291 = arith.mulf %289, %290 : vector<8x8xf32>
    %292 = vector.extract_strided_slice %270 {offsets = [0, 8], sizes = [8, 8], strides = [1, 1]} : vector<16x32xf32> to vector<8x8xf32>
    %293 = vector.extract_strided_slice %271 {offsets = [0, 8], sizes = [8, 8], strides = [1, 1]} : vector<16x32xf32> to vector<8x8xf32>
    %cst_115 = arith.constant dense<0.000000e+00> : vector<8x8xf32>
    %294 = tpu.matmul %291, %292, %cst_115 {dimension_numbers = #tpu.dot_dimension_numbers<[1], [1], [0], [0], [0, 0, 1, 0], [], []>} : vector<8x8xf32>, vector<8x8xf32>, vector<8x8xf32> -> vector<8x8xf32>
    %cst_116 = arith.constant dense<0xFF800000> : vector<8xf32>
    %295 = vector.multi_reduction <maximumf>, %294, %cst_116 [1] : vector<8x8xf32> to vector<8xf32>
    %296 = vector.shape_cast %295 : vector<8xf32> to vector<8x1xf32>
    %297 = vector.broadcast %296 : vector<8x1xf32> to vector<8x8xf32>
    %298 = arith.subf %294, %297 : vector<8x8xf32>
    %299 = math.exp %298 : vector<8x8xf32>
    %cst_117 = arith.constant dense<0.000000e+00> : vector<8xf32>
    %300 = vector.multi_reduction <add>, %299, %cst_117 [1] : vector<8x8xf32> to vector<8xf32>
    %301 = vector.shape_cast %300 : vector<8xf32> to vector<8x1xf32>
    %302 = tpu.reciprocal %301 {approx = true} : vector<8x1xf32> -> vector<8x1xf32>
    %303 = vector.broadcast %302 : vector<8x1xf32> to vector<8x8xf32>
    %304 = arith.mulf %299, %303 : vector<8x8xf32>
    %cst_118 = arith.constant dense<0.000000e+00> : vector<8x8xf32>
    %305 = tpu.matmul %304, %293, %cst_118 {dimension_numbers = #tpu.dot_dimension_numbers<[1], [0], [0], [1], [0, 0, 1, 1], [], []>} : vector<8x8xf32>, vector<8x8xf32>, vector<8x8xf32> -> vector<8x8xf32>
    %306 = vector.extract_strided_slice %269 {offsets = [0, 16], sizes = [8, 8], strides = [1, 1]} : vector<16x32xf32> to vector<8x8xf32>
    %cst_119 = arith.constant 0.353553385 : f32
    %307 = vector.broadcast %cst_119 : f32 to vector<8x8xf32>
    %308 = arith.mulf %306, %307 : vector<8x8xf32>
    %309 = vector.extract_strided_slice %270 {offsets = [0, 16], sizes = [8, 8], strides = [1, 1]} : vector<16x32xf32> to vector<8x8xf32>
    %310 = vector.extract_strided_slice %271 {offsets = [0, 16], sizes = [8, 8], strides = [1, 1]} : vector<16x32xf32> to vector<8x8xf32>
    %cst_120 = arith.constant dense<0.000000e+00> : vector<8x8xf32>
    %311 = tpu.matmul %308, %309, %cst_120 {dimension_numbers = #tpu.dot_dimension_numbers<[1], [1], [0], [0], [0, 0, 1, 0], [], []>} : vector<8x8xf32>, vector<8x8xf32>, vector<8x8xf32> -> vector<8x8xf32>
    %cst_121 = arith.constant dense<0xFF800000> : vector<8xf32>
    %312 = vector.multi_reduction <maximumf>, %311, %cst_121 [1] : vector<8x8xf32> to vector<8xf32>
    %313 = vector.shape_cast %312 : vector<8xf32> to vector<8x1xf32>
    %314 = vector.broadcast %313 : vector<8x1xf32> to vector<8x8xf32>
    %315 = arith.subf %311, %314 : vector<8x8xf32>
    %316 = math.exp %315 : vector<8x8xf32>
    %cst_122 = arith.constant dense<0.000000e+00> : vector<8xf32>
    %317 = vector.multi_reduction <add>, %316, %cst_122 [1] : vector<8x8xf32> to vector<8xf32>
    %318 = vector.shape_cast %317 : vector<8xf32> to vector<8x1xf32>
    %319 = tpu.reciprocal %318 {approx = true} : vector<8x1xf32> -> vector<8x1xf32>
    %320 = vector.broadcast %319 : vector<8x1xf32> to vector<8x8xf32>
    %321 = arith.mulf %316, %320 : vector<8x8xf32>
    %cst_123 = arith.constant dense<0.000000e+00> : vector<8x8xf32>
    %322 = tpu.matmul %321, %310, %cst_123 {dimension_numbers = #tpu.dot_dimension_numbers<[1], [0], [0], [1], [0, 0, 1, 1], [], []>} : vector<8x8xf32>, vector<8x8xf32>, vector<8x8xf32> -> vector<8x8xf32>
    %323 = vector.extract_strided_slice %269 {offsets = [0, 24], sizes = [8, 8], strides = [1, 1]} : vector<16x32xf32> to vector<8x8xf32>
    %cst_124 = arith.constant 0.353553385 : f32
    %324 = vector.broadcast %cst_124 : f32 to vector<8x8xf32>
    %325 = arith.mulf %323, %324 : vector<8x8xf32>
    %326 = vector.extract_strided_slice %270 {offsets = [0, 24], sizes = [8, 8], strides = [1, 1]} : vector<16x32xf32> to vector<8x8xf32>
    %327 = vector.extract_strided_slice %271 {offsets = [0, 24], sizes = [8, 8], strides = [1, 1]} : vector<16x32xf32> to vector<8x8xf32>
    %cst_125 = arith.constant dense<0.000000e+00> : vector<8x8xf32>
    %328 = tpu.matmul %325, %326, %cst_125 {dimension_numbers = #tpu.dot_dimension_numbers<[1], [1], [0], [0], [0, 0, 1, 0], [], []>} : vector<8x8xf32>, vector<8x8xf32>, vector<8x8xf32> -> vector<8x8xf32>
    %cst_126 = arith.constant dense<0xFF800000> : vector<8xf32>
    %329 = vector.multi_reduction <maximumf>, %328, %cst_126 [1] : vector<8x8xf32> to vector<8xf32>
    %330 = vector.shape_cast %329 : vector<8xf32> to vector<8x1xf32>
    %331 = vector.broadcast %330 : vector<8x1xf32> to vector<8x8xf32>
    %332 = arith.subf %328, %331 : vector<8x8xf32>
    %333 = math.exp %332 : vector<8x8xf32>
    %cst_127 = arith.constant dense<0.000000e+00> : vector<8xf32>
    %334 = vector.multi_reduction <add>, %333, %cst_127 [1] : vector<8x8xf32> to vector<8xf32>
    %335 = vector.shape_cast %334 : vector<8xf32> to vector<8x1xf32>
    %336 = tpu.reciprocal %335 {approx = true} : vector<8x1xf32> -> vector<8x1xf32>
    %337 = vector.broadcast %336 : vector<8x1xf32> to vector<8x8xf32>
    %338 = arith.mulf %333, %337 : vector<8x8xf32>
    %cst_128 = arith.constant dense<0.000000e+00> : vector<8x8xf32>
    %339 = tpu.matmul %338, %327, %cst_128 {dimension_numbers = #tpu.dot_dimension_numbers<[1], [0], [0], [1], [0, 0, 1, 1], [], []>} : vector<8x8xf32>, vector<8x8xf32>, vector<8x8xf32> -> vector<8x8xf32>
    %340 = tpu.concatenate %288, %305, %322, %339 in 1 : vector<8x8xf32>, vector<8x8xf32>, vector<8x8xf32>, vector<8x8xf32> -> vector<8x32xf32>
    %341 = vector.extract_strided_slice %269 {offsets = [8, 0], sizes = [8, 8], strides = [1, 1]} : vector<16x32xf32> to vector<8x8xf32>
    %cst_129 = arith.constant 0.353553385 : f32
    %342 = vector.broadcast %cst_129 : f32 to vector<8x8xf32>
    %343 = arith.mulf %341, %342 : vector<8x8xf32>
    %344 = vector.extract_strided_slice %270 {offsets = [8, 0], sizes = [8, 8], strides = [1, 1]} : vector<16x32xf32> to vector<8x8xf32>
    %345 = vector.extract_strided_slice %271 {offsets = [8, 0], sizes = [8, 8], strides = [1, 1]} : vector<16x32xf32> to vector<8x8xf32>
    %cst_130 = arith.constant dense<0.000000e+00> : vector<8x8xf32>
    %346 = tpu.matmul %343, %344, %cst_130 {dimension_numbers = #tpu.dot_dimension_numbers<[1], [1], [0], [0], [0, 0, 1, 0], [], []>} : vector<8x8xf32>, vector<8x8xf32>, vector<8x8xf32> -> vector<8x8xf32>
    %cst_131 = arith.constant dense<0xFF800000> : vector<8xf32>
    %347 = vector.multi_reduction <maximumf>, %346, %cst_131 [1] : vector<8x8xf32> to vector<8xf32>
    %348 = vector.shape_cast %347 : vector<8xf32> to vector<8x1xf32>
    %349 = vector.broadcast %348 : vector<8x1xf32> to vector<8x8xf32>
    %350 = arith.subf %346, %349 : vector<8x8xf32>
    %351 = math.exp %350 : vector<8x8xf32>
    %cst_132 = arith.constant dense<0.000000e+00> : vector<8xf32>
    %352 = vector.multi_reduction <add>, %351, %cst_132 [1] : vector<8x8xf32> to vector<8xf32>
    %353 = vector.shape_cast %352 : vector<8xf32> to vector<8x1xf32>
    %354 = tpu.reciprocal %353 {approx = true} : vector<8x1xf32> -> vector<8x1xf32>
    %355 = vector.broadcast %354 : vector<8x1xf32> to vector<8x8xf32>
    %356 = arith.mulf %351, %355 : vector<8x8xf32>
    %cst_133 = arith.constant dense<0.000000e+00> : vector<8x8xf32>
    %357 = tpu.matmul %356, %345, %cst_133 {dimension_numbers = #tpu.dot_dimension_numbers<[1], [0], [0], [1], [0, 0, 1, 1], [], []>} : vector<8x8xf32>, vector<8x8xf32>, vector<8x8xf32> -> vector<8x8xf32>
    %358 = vector.extract_strided_slice %269 {offsets = [8, 8], sizes = [8, 8], strides = [1, 1]} : vector<16x32xf32> to vector<8x8xf32>
    %cst_134 = arith.constant 0.353553385 : f32
    %359 = vector.broadcast %cst_134 : f32 to vector<8x8xf32>
    %360 = arith.mulf %358, %359 : vector<8x8xf32>
    %361 = vector.extract_strided_slice %270 {offsets = [8, 8], sizes = [8, 8], strides = [1, 1]} : vector<16x32xf32> to vector<8x8xf32>
    %362 = vector.extract_strided_slice %271 {offsets = [8, 8], sizes = [8, 8], strides = [1, 1]} : vector<16x32xf32> to vector<8x8xf32>
    %cst_135 = arith.constant dense<0.000000e+00> : vector<8x8xf32>
    %363 = tpu.matmul %360, %361, %cst_135 {dimension_numbers = #tpu.dot_dimension_numbers<[1], [1], [0], [0], [0, 0, 1, 0], [], []>} : vector<8x8xf32>, vector<8x8xf32>, vector<8x8xf32> -> vector<8x8xf32>
    %cst_136 = arith.constant dense<0xFF800000> : vector<8xf32>
    %364 = vector.multi_reduction <maximumf>, %363, %cst_136 [1] : vector<8x8xf32> to vector<8xf32>
    %365 = vector.shape_cast %364 : vector<8xf32> to vector<8x1xf32>
    %366 = vector.broadcast %365 : vector<8x1xf32> to vector<8x8xf32>
    %367 = arith.subf %363, %366 : vector<8x8xf32>
    %368 = math.exp %367 : vector<8x8xf32>
    %cst_137 = arith.constant dense<0.000000e+00> : vector<8xf32>
    %369 = vector.multi_reduction <add>, %368, %cst_137 [1] : vector<8x8xf32> to vector<8xf32>
    %370 = vector.shape_cast %369 : vector<8xf32> to vector<8x1xf32>
    %371 = tpu.reciprocal %370 {approx = true} : vector<8x1xf32> -> vector<8x1xf32>
    %372 = vector.broadcast %371 : vector<8x1xf32> to vector<8x8xf32>
    %373 = arith.mulf %368, %372 : vector<8x8xf32>
    %cst_138 = arith.constant dense<0.000000e+00> : vector<8x8xf32>
    %374 = tpu.matmul %373, %362, %cst_138 {dimension_numbers = #tpu.dot_dimension_numbers<[1], [0], [0], [1], [0, 0, 1, 1], [], []>} : vector<8x8xf32>, vector<8x8xf32>, vector<8x8xf32> -> vector<8x8xf32>
    %375 = vector.extract_strided_slice %269 {offsets = [8, 16], sizes = [8, 8], strides = [1, 1]} : vector<16x32xf32> to vector<8x8xf32>
    %cst_139 = arith.constant 0.353553385 : f32
    %376 = vector.broadcast %cst_139 : f32 to vector<8x8xf32>
    %377 = arith.mulf %375, %376 : vector<8x8xf32>
    %378 = vector.extract_strided_slice %270 {offsets = [8, 16], sizes = [8, 8], strides = [1, 1]} : vector<16x32xf32> to vector<8x8xf32>
    %379 = vector.extract_strided_slice %271 {offsets = [8, 16], sizes = [8, 8], strides = [1, 1]} : vector<16x32xf32> to vector<8x8xf32>
    %cst_140 = arith.constant dense<0.000000e+00> : vector<8x8xf32>
    %380 = tpu.matmul %377, %378, %cst_140 {dimension_numbers = #tpu.dot_dimension_numbers<[1], [1], [0], [0], [0, 0, 1, 0], [], []>} : vector<8x8xf32>, vector<8x8xf32>, vector<8x8xf32> -> vector<8x8xf32>
    %cst_141 = arith.constant dense<0xFF800000> : vector<8xf32>
    %381 = vector.multi_reduction <maximumf>, %380, %cst_141 [1] : vector<8x8xf32> to vector<8xf32>
    %382 = vector.shape_cast %381 : vector<8xf32> to vector<8x1xf32>
    %383 = vector.broadcast %382 : vector<8x1xf32> to vector<8x8xf32>
    %384 = arith.subf %380, %383 : vector<8x8xf32>
    %385 = math.exp %384 : vector<8x8xf32>
    %cst_142 = arith.constant dense<0.000000e+00> : vector<8xf32>
    %386 = vector.multi_reduction <add>, %385, %cst_142 [1] : vector<8x8xf32> to vector<8xf32>
    %387 = vector.shape_cast %386 : vector<8xf32> to vector<8x1xf32>
    %388 = tpu.reciprocal %387 {approx = true} : vector<8x1xf32> -> vector<8x1xf32>
    %389 = vector.broadcast %388 : vector<8x1xf32> to vector<8x8xf32>
    %390 = arith.mulf %385, %389 : vector<8x8xf32>
    %cst_143 = arith.constant dense<0.000000e+00> : vector<8x8xf32>
    %391 = tpu.matmul %390, %379, %cst_143 {dimension_numbers = #tpu.dot_dimension_numbers<[1], [0], [0], [1], [0, 0, 1, 1], [], []>} : vector<8x8xf32>, vector<8x8xf32>, vector<8x8xf32> -> vector<8x8xf32>
    %392 = vector.extract_strided_slice %269 {offsets = [8, 24], sizes = [8, 8], strides = [1, 1]} : vector<16x32xf32> to vector<8x8xf32>
    %cst_144 = arith.constant 0.353553385 : f32
    %393 = vector.broadcast %cst_144 : f32 to vector<8x8xf32>
    %394 = arith.mulf %392, %393 : vector<8x8xf32>
    %395 = vector.extract_strided_slice %270 {offsets = [8, 24], sizes = [8, 8], strides = [1, 1]} : vector<16x32xf32> to vector<8x8xf32>
    %396 = vector.extract_strided_slice %271 {offsets = [8, 24], sizes = [8, 8], strides = [1, 1]} : vector<16x32xf32> to vector<8x8xf32>
    %cst_145 = arith.constant dense<0.000000e+00> : vector<8x8xf32>
    %397 = tpu.matmul %394, %395, %cst_145 {dimension_numbers = #tpu.dot_dimension_numbers<[1], [1], [0], [0], [0, 0, 1, 0], [], []>} : vector<8x8xf32>, vector<8x8xf32>, vector<8x8xf32> -> vector<8x8xf32>
    %cst_146 = arith.constant dense<0xFF800000> : vector<8xf32>
    %398 = vector.multi_reduction <maximumf>, %397, %cst_146 [1] : vector<8x8xf32> to vector<8xf32>
    %399 = vector.shape_cast %398 : vector<8xf32> to vector<8x1xf32>
    %400 = vector.broadcast %399 : vector<8x1xf32> to vector<8x8xf32>
    %401 = arith.subf %397, %400 : vector<8x8xf32>
    %402 = math.exp %401 : vector<8x8xf32>
    %cst_147 = arith.constant dense<0.000000e+00> : vector<8xf32>
    %403 = vector.multi_reduction <add>, %402, %cst_147 [1] : vector<8x8xf32> to vector<8xf32>
    %404 = vector.shape_cast %403 : vector<8xf32> to vector<8x1xf32>
    %405 = tpu.reciprocal %404 {approx = true} : vector<8x1xf32> -> vector<8x1xf32>
    %406 = vector.broadcast %405 : vector<8x1xf32> to vector<8x8xf32>
    %407 = arith.mulf %402, %406 : vector<8x8xf32>
    %cst_148 = arith.constant dense<0.000000e+00> : vector<8x8xf32>
    %408 = tpu.matmul %407, %396, %cst_148 {dimension_numbers = #tpu.dot_dimension_numbers<[1], [0], [0], [1], [0, 0, 1, 1], [], []>} : vector<8x8xf32>, vector<8x8xf32>, vector<8x8xf32> -> vector<8x8xf32>
    %409 = tpu.concatenate %357, %374, %391, %408 in 1 : vector<8x8xf32>, vector<8x8xf32>, vector<8x8xf32>, vector<8x8xf32> -> vector<8x32xf32>
    %410 = tpu.concatenate %340, %409 in 0 : vector<8x32xf32>, vector<8x32xf32> -> vector<16x32xf32>
    %c1_149 = arith.constant 1 : index
    %c0_150 = arith.constant 0 : index
    %c0_151 = arith.constant 0 : index
    %411 = vector.load %arg6[%c1_149, %c0_150, %c0_151] : memref<2x32x32xf32, #tpu.memory_space<vmem>>, vector<1x32x32xf32>
    %412 = vector.shape_cast %411 : vector<1x32x32xf32> to vector<32x32xf32>
    %cst_152 = arith.constant dense<0.000000e+00> : vector<16x32xf32>
    %413 = tpu.matmul %410, %412, %cst_152 {dimension_numbers = #tpu.dot_dimension_numbers<[1], [0], [0], [1], [0, 0, 1, 1], [], []>} : vector<16x32xf32>, vector<32x32xf32>, vector<16x32xf32> -> vector<16x32xf32>
    %c1_153 = arith.constant 1 : index
    %c0_154 = arith.constant 0 : index
    %c0_155 = arith.constant 0 : index
    %414 = vector.load %arg7[%c1_153, %c0_154, %c0_155] : memref<2x1x32xf32, #tpu.memory_space<vmem>>, vector<1x1x32xf32>
    %415 = vector.shape_cast %414 : vector<1x1x32xf32> to vector<1x32xf32>
    %416 = vector.broadcast %415 : vector<1x32xf32> to vector<16x32xf32>
    %417 = arith.addf %413, %416 : vector<16x32xf32>
    %418 = arith.addf %261, %417 : vector<16x32xf32>
    %c1_156 = arith.constant 1 : index
    %c0_157 = arith.constant 0 : index
    %c0_158 = arith.constant 0 : index
    %419 = vector.load %arg8[%c1_156, %c0_157, %c0_158] : memref<2x1x32xf32, #tpu.memory_space<vmem>>, vector<1x1x32xf32>
    %420 = vector.shape_cast %419 : vector<1x1x32xf32> to vector<1x32xf32>
    %c1_159 = arith.constant 1 : index
    %c0_160 = arith.constant 0 : index
    %c0_161 = arith.constant 0 : index
    %421 = vector.load %arg9[%c1_159, %c0_160, %c0_161] : memref<2x1x32xf32, #tpu.memory_space<vmem>>, vector<1x1x32xf32>
    %422 = vector.shape_cast %421 : vector<1x1x32xf32> to vector<1x32xf32>
    %cst_162 = arith.constant dense<0.000000e+00> : vector<16xf32>
    %423 = vector.multi_reduction <add>, %418, %cst_162 [1] : vector<16x32xf32> to vector<16xf32>
    %424 = vector.shape_cast %423 : vector<16xf32> to vector<16x1xf32>
    %cst_163 = arith.constant 3.200000e+01 : f32
    %425 = vector.broadcast %cst_163 : f32 to vector<16x1xf32>
    %426 = arith.divf %424, %425 : vector<16x1xf32>
    %427 = vector.broadcast %426 : vector<16x1xf32> to vector<16x32xf32>
    %428 = arith.subf %418, %427 : vector<16x32xf32>
    %429 = arith.mulf %428, %428 : vector<16x32xf32>
    %cst_164 = arith.constant dense<0.000000e+00> : vector<16xf32>
    %430 = vector.multi_reduction <add>, %429, %cst_164 [1] : vector<16x32xf32> to vector<16xf32>
    %431 = vector.shape_cast %430 : vector<16xf32> to vector<16x1xf32>
    %cst_165 = arith.constant 3.200000e+01 : f32
    %432 = vector.broadcast %cst_165 : f32 to vector<16x1xf32>
    %433 = arith.divf %431, %432 : vector<16x1xf32>
    %434 = vector.broadcast %426 : vector<16x1xf32> to vector<16x32xf32>
    %435 = arith.subf %418, %434 : vector<16x32xf32>
    %cst_166 = arith.constant 9.99999996E-13 : f32
    %436 = vector.broadcast %cst_166 : f32 to vector<16x1xf32>
    %437 = arith.addf %433, %436 : vector<16x1xf32>
    %438 = math.rsqrt %437 : vector<16x1xf32>
    %439 = vector.broadcast %438 : vector<16x1xf32> to vector<16x32xf32>
    %440 = arith.mulf %435, %439 : vector<16x32xf32>
    %441 = vector.broadcast %420 : vector<1x32xf32> to vector<16x32xf32>
    %442 = arith.mulf %440, %441 : vector<16x32xf32>
    %443 = vector.broadcast %422 : vector<1x32xf32> to vector<16x32xf32>
    %444 = arith.addf %442, %443 : vector<16x32xf32>
    %c1_167 = arith.constant 1 : index
    %c0_168 = arith.constant 0 : index
    %c0_169 = arith.constant 0 : index
    %445 = vector.load %arg10[%c1_167, %c0_168, %c0_169] : memref<2x32x64xf32, #tpu.memory_space<vmem>>, vector<1x32x64xf32>
    %446 = vector.shape_cast %445 : vector<1x32x64xf32> to vector<32x64xf32>
    %cst_170 = arith.constant dense<0.000000e+00> : vector<16x64xf32>
    %447 = tpu.matmul %444, %446, %cst_170 {dimension_numbers = #tpu.dot_dimension_numbers<[1], [0], [0], [1], [0, 0, 1, 1], [], []>} : vector<16x32xf32>, vector<32x64xf32>, vector<16x64xf32> -> vector<16x64xf32>
    %c1_171 = arith.constant 1 : index
    %c0_172 = arith.constant 0 : index
    %c0_173 = arith.constant 0 : index
    %448 = vector.load %arg11[%c1_171, %c0_172, %c0_173] : memref<2x1x64xf32, #tpu.memory_space<vmem>>, vector<1x1x64xf32>
    %449 = vector.shape_cast %448 : vector<1x1x64xf32> to vector<1x64xf32>
    %450 = vector.broadcast %449 : vector<1x64xf32> to vector<16x64xf32>
    %451 = arith.addf %447, %450 : vector<16x64xf32>
    %452 = arith.mulf %451, %451 : vector<16x64xf32>
    %453 = arith.mulf %451, %452 : vector<16x64xf32>
    %cst_174 = arith.constant 4.471500e-02 : f32
    %454 = vector.broadcast %cst_174 : f32 to vector<16x64xf32>
    %455 = arith.mulf %454, %453 : vector<16x64xf32>
    %456 = arith.addf %451, %455 : vector<16x64xf32>
    %cst_175 = arith.constant 0.797884583 : f32
    %457 = vector.broadcast %cst_175 : f32 to vector<16x64xf32>
    %458 = arith.mulf %457, %456 : vector<16x64xf32>
    %459 = math.tanh %458 : vector<16x64xf32>
    %cst_176 = arith.constant 1.000000e+00 : f32
    %460 = vector.broadcast %cst_176 : f32 to vector<16x64xf32>
    %461 = arith.addf %460, %459 : vector<16x64xf32>
    %cst_177 = arith.constant 5.000000e-01 : f32
    %462 = vector.broadcast %cst_177 : f32 to vector<16x64xf32>
    %463 = arith.mulf %462, %461 : vector<16x64xf32>
    %464 = arith.mulf %451, %463 : vector<16x64xf32>
    %c1_178 = arith.constant 1 : index
    %c0_179 = arith.constant 0 : index
    %c0_180 = arith.constant 0 : index
    %465 = vector.load %arg12[%c1_178, %c0_179, %c0_180] : memref<2x64x32xf32, #tpu.memory_space<vmem>>, vector<1x64x32xf32>
    %466 = vector.shape_cast %465 : vector<1x64x32xf32> to vector<64x32xf32>
    %cst_181 = arith.constant dense<0.000000e+00> : vector<16x32xf32>
    %467 = tpu.matmul %464, %466, %cst_181 {dimension_numbers = #tpu.dot_dimension_numbers<[1], [0], [0], [1], [0, 0, 1, 1], [], []>} : vector<16x64xf32>, vector<64x32xf32>, vector<16x32xf32> -> vector<16x32xf32>
    %c1_182 = arith.constant 1 : index
    %c0_183 = arith.constant 0 : index
    %c0_184 = arith.constant 0 : index
    %468 = vector.load %arg13[%c1_182, %c0_183, %c0_184] : memref<2x1x32xf32, #tpu.memory_space<vmem>>, vector<1x1x32xf32>
    %469 = vector.shape_cast %468 : vector<1x1x32xf32> to vector<1x32xf32>
    %470 = vector.broadcast %469 : vector<1x32xf32> to vector<16x32xf32>
    %471 = arith.addf %467, %470 : vector<16x32xf32>
    %472 = arith.addf %444, %471 : vector<16x32xf32>
    %c1_185 = arith.constant 1 : index
    %c0_186 = arith.constant 0 : index
    %c0_187 = arith.constant 0 : index
    %473 = vector.load %arg14[%c1_185, %c0_186, %c0_187] : memref<2x1x32xf32, #tpu.memory_space<vmem>>, vector<1x1x32xf32>
    %474 = vector.shape_cast %473 : vector<1x1x32xf32> to vector<1x32xf32>
    %c1_188 = arith.constant 1 : index
    %c0_189 = arith.constant 0 : index
    %c0_190 = arith.constant 0 : index
    %475 = vector.load %arg15[%c1_188, %c0_189, %c0_190] : memref<2x1x32xf32, #tpu.memory_space<vmem>>, vector<1x1x32xf32>
    %476 = vector.shape_cast %475 : vector<1x1x32xf32> to vector<1x32xf32>
    %cst_191 = arith.constant dense<0.000000e+00> : vector<16xf32>
    %477 = vector.multi_reduction <add>, %472, %cst_191 [1] : vector<16x32xf32> to vector<16xf32>
    %478 = vector.shape_cast %477 : vector<16xf32> to vector<16x1xf32>
    %cst_192 = arith.constant 3.200000e+01 : f32
    %479 = vector.broadcast %cst_192 : f32 to vector<16x1xf32>
    %480 = arith.divf %478, %479 : vector<16x1xf32>
    %481 = vector.broadcast %480 : vector<16x1xf32> to vector<16x32xf32>
    %482 = arith.subf %472, %481 : vector<16x32xf32>
    %483 = arith.mulf %482, %482 : vector<16x32xf32>
    %cst_193 = arith.constant dense<0.000000e+00> : vector<16xf32>
    %484 = vector.multi_reduction <add>, %483, %cst_193 [1] : vector<16x32xf32> to vector<16xf32>
    %485 = vector.shape_cast %484 : vector<16xf32> to vector<16x1xf32>
    %cst_194 = arith.constant 3.200000e+01 : f32
    %486 = vector.broadcast %cst_194 : f32 to vector<16x1xf32>
    %487 = arith.divf %485, %486 : vector<16x1xf32>
    %488 = vector.broadcast %480 : vector<16x1xf32> to vector<16x32xf32>
    %489 = arith.subf %472, %488 : vector<16x32xf32>
    %cst_195 = arith.constant 9.99999996E-13 : f32
    %490 = vector.broadcast %cst_195 : f32 to vector<16x1xf32>
    %491 = arith.addf %487, %490 : vector<16x1xf32>
    %492 = math.rsqrt %491 : vector<16x1xf32>
    %493 = vector.broadcast %492 : vector<16x1xf32> to vector<16x32xf32>
    %494 = arith.mulf %489, %493 : vector<16x32xf32>
    %495 = vector.broadcast %474 : vector<1x32xf32> to vector<16x32xf32>
    %496 = arith.mulf %494, %495 : vector<16x32xf32>
    %497 = vector.broadcast %476 : vector<1x32xf32> to vector<16x32xf32>
    %498 = arith.addf %496, %497 : vector<16x32xf32>
    %499 = vector.extract_strided_slice %498 {offsets = [0, 0], sizes = [1, 32], strides = [1, 1]} : vector<16x32xf32> to vector<1x32xf32>
    %500 = vector.extract_strided_slice %498 {offsets = [8, 0], sizes = [1, 32], strides = [1, 1]} : vector<16x32xf32> to vector<1x32xf32>
    %501 = tpu.concatenate %499, %500 in 0 : vector<1x32xf32>, vector<1x32xf32> -> vector<2x32xf32>
    %502 = math.tanh %501 : vector<2x32xf32>
    %c0_196 = arith.constant 0 : index
    %c0_197 = arith.constant 0 : index
    %503 = vector.load %arg16[%c0_196, %c0_197] : memref<32x128xf32, #tpu.memory_space<vmem>>, vector<32x128xf32>
    %cst_198 = arith.constant dense<0.000000e+00> : vector<2x128xf32>
    %504 = tpu.matmul %502, %503, %cst_198 {dimension_numbers = #tpu.dot_dimension_numbers<[1], [0], [0], [1], [0, 0, 1, 1], [], []>} : vector<2x32xf32>, vector<32x128xf32>, vector<2x128xf32> -> vector<2x128xf32>
    %c0_199 = arith.constant 0 : index
    %c0_200 = arith.constant 0 : index
    %505 = vector.load %arg17[%c0_199, %c0_200] : memref<1x128xf32, #tpu.memory_space<vmem>>, vector<1x128xf32>
    %506 = vector.broadcast %505 : vector<1x128xf32> to vector<2x128xf32>
    %507 = arith.addf %504, %506 : vector<2x128xf32>
    %c0_201 = arith.constant 0 : index
    %c0_202 = arith.constant 0 : index
    %508 = vector.load %arg18[%c0_201, %c0_202] : memref<2x128xf32, #tpu.memory_space<vmem>>, vector<2x128xf32>
    tpu.vector_store %arg18[%c0_201, %c0_202], %507 {strides = array<i32>} : memref<2x128xf32, #tpu.memory_space<vmem>>, vector<2x128xf32>,
    return
  }
  func.func @transform_0(%arg0: i32) -> (i32, i32) {
    %c0_i32 = arith.constant 0 : i32
    %c0_i32_0 = arith.constant 0 : i32
    %c0_i32_1 = arith.constant 0 : i32
    return %c0_i32, %c0_i32_0 : i32, i32
  }
  func.func @transform_1(%arg0: i32) -> (i32, i32) {
    %c0_i32 = arith.constant 0 : i32
    %c0_i32_0 = arith.constant 0 : i32
    %c0_i32_1 = arith.constant 0 : i32
    return %c0_i32, %c0_i32_0 : i32, i32
  }
  func.func @transform_2(%arg0: i32) -> (i32, i32) {
    %c0_i32 = arith.constant 0 : i32
    %c0_i32_0 = arith.constant 0 : i32
    %c0_i32_1 = arith.constant 0 : i32
    return %c0_i32, %c0_i32_0 : i32, i32
  }
  func.func @transform_3(%arg0: i32) -> (i32, i32, i32) {
    %c0_i32 = arith.constant 0 : i32
    %c0_i32_0 = arith.constant 0 : i32
    %c0_i32_1 = arith.constant 0 : i32
    %c0_i32_2 = arith.constant 0 : i32
    return %c0_i32, %c0_i32_0, %c0_i32_1 : i32, i32, i32
  }
  func.func @transform_4(%arg0: i32) -> (i32, i32, i32) {
    %c0_i32 = arith.constant 0 : i32
    %c0_i32_0 = arith.constant 0 : i32
    %c0_i32_1 = arith.constant 0 : i32
    %c0_i32_2 = arith.constant 0 : i32
    return %c0_i32, %c0_i32_0, %c0_i32_1 : i32, i32, i32
  }
  func.func @transform_5(%arg0: i32) -> (i32, i32, i32) {
    %c0_i32 = arith.constant 0 : i32
    %c0_i32_0 = arith.constant 0 : i32
    %c0_i32_1 = arith.constant 0 : i32
    %c0_i32_2 = arith.constant 0 : i32
    return %c0_i32, %c0_i32_0, %c0_i32_1 : i32, i32, i32
  }
  func.func @transform_6(%arg0: i32) -> (i32, i32, i32) {
    %c0_i32 = arith.constant 0 : i32
    %c0_i32_0 = arith.constant 0 : i32
    %c0_i32_1 = arith.constant 0 : i32
    %c0_i32_2 = arith.constant 0 : i32
    return %c0_i32, %c0_i32_0, %c0_i32_1 : i32, i32, i32
  }
  func.func @transform_7(%arg0: i32) -> (i32, i32, i32) {
    %c0_i32 = arith.constant 0 : i32
    %c0_i32_0 = arith.constant 0 : i32
    %c0_i32_1 = arith.constant 0 : i32
    %c0_i32_2 = arith.constant 0 : i32
    return %c0_i32, %c0_i32_0, %c0_i32_1 : i32, i32, i32
  }
  func.func @transform_8(%arg0: i32) -> (i32, i32, i32) {
    %c0_i32 = arith.constant 0 : i32
    %c0_i32_0 = arith.constant 0 : i32
    %c0_i32_1 = arith.constant 0 : i32
    %c0_i32_2 = arith.constant 0 : i32
    return %c0_i32, %c0_i32_0, %c0_i32_1 : i32, i32, i32
  }
  func.func @transform_9(%arg0: i32) -> (i32, i32, i32) {
    %c0_i32 = arith.constant 0 : i32
    %c0_i32_0 = arith.constant 0 : i32
    %c0_i32_1 = arith.constant 0 : i32
    %c0_i32_2 = arith.constant 0 : i32
    return %c0_i32, %c0_i32_0, %c0_i32_1 : i32, i32, i32
  }
  func.func @transform_10(%arg0: i32) -> (i32, i32, i32) {
    %c0_i32 = arith.constant 0 : i32
    %c0_i32_0 = arith.constant 0 : i32
    %c0_i32_1 = arith.constant 0 : i32
    %c0_i32_2 = arith.constant 0 : i32
    return %c0_i32, %c0_i32_0, %c0_i32_1 : i32, i32, i32
  }
  func.func @transform_11(%arg0: i32) -> (i32, i32, i32) {
    %c0_i32 = arith.constant 0 : i32
    %c0_i32_0 = arith.constant 0 : i32
    %c0_i32_1 = arith.constant 0 : i32
    %c0_i32_2 = arith.constant 0 : i32
    return %c0_i32, %c0_i32_0, %c0_i32_1 : i32, i32, i32
  }
  func.func @transform_12(%arg0: i32) -> (i32, i32, i32) {
    %c0_i32 = arith.constant 0 : i32
    %c0_i32_0 = arith.constant 0 : i32
    %c0_i32_1 = arith.constant 0 : i32
    %c0_i32_2 = arith.constant 0 : i32
    return %c0_i32, %c0_i32_0, %c0_i32_1 : i32, i32, i32
  }
  func.func @transform_13(%arg0: i32) -> (i32, i32, i32) {
    %c0_i32 = arith.constant 0 : i32
    %c0_i32_0 = arith.constant 0 : i32
    %c0_i32_1 = arith.constant 0 : i32
    %c0_i32_2 = arith.constant 0 : i32
    return %c0_i32, %c0_i32_0, %c0_i32_1 : i32, i32, i32
  }
  func.func @transform_14(%arg0: i32) -> (i32, i32, i32) {
    %c0_i32 = arith.constant 0 : i32
    %c0_i32_0 = arith.constant 0 : i32
    %c0_i32_1 = arith.constant 0 : i32
    %c0_i32_2 = arith.constant 0 : i32
    return %c0_i32, %c0_i32_0, %c0_i32_1 : i32, i32, i32
  }
  func.func @transform_15(%arg0: i32) -> (i32, i32) {
    %c0_i32 = arith.constant 0 : i32
    %c0_i32_0 = arith.constant 0 : i32
    %c0_i32_1 = arith.constant 0 : i32
    return %c0_i32, %c0_i32_0 : i32, i32
  }
  func.func @transform_16(%arg0: i32) -> (i32, i32) {
    %c0_i32 = arith.constant 0 : i32
    %c0_i32_0 = arith.constant 0 : i32
    %c0_i32_1 = arith.constant 0 : i32
    return %c0_i32, %c0_i32_0 : i32, i32
  }
  func.func @transform_17(%arg0: i32) -> (i32, i32) {
    %c0_i32 = arith.constant 0 : i32
    %c0_i32_0 = arith.constant 0 : i32
    %c0_i32_1 = arith.constant 0 : i32
    return %c0_i32, %c0_i32_0 : i32, i32
  }
}

</mosaic_0001>

<llo_original>
// kernel: transformer_forward.1
$region0: #{transformer_forward.1}
  #allocation0 [shape = 'u32[]', space=smem, size = 0x4, offset = 0x4, fixed_abs, tag = 'smem constant byte address 0x4 - core index']
  #allocation1 [shape = 'u32[72,128]{1,0:T(1,128)}', space=vmem, size = 0x9000, scoped, tag = 'internal scratch']
  %s0 = inlined_call_operand.vmem [shape: f32[16,32], index: 0, kind: input, shape index: {}]
  %s1 = inlined_call_operand.vmem [shape: f32[1,32], index: 1, kind: input, shape index: {}]
  %s2 = inlined_call_operand.vmem [shape: f32[1,32], index: 2, kind: input, shape index: {}]
  %s3 = inlined_call_operand.vmem [shape: f32[2,32,96], index: 3, kind: input, shape index: {}]
  %s4 = inlined_call_operand.vmem [shape: f32[2,1,96], index: 4, kind: input, shape index: {}]
  %s5 = inlined_call_operand.vmem [shape: f32[2,32,32], index: 5, kind: input, shape index: {}]
  %s6 = inlined_call_operand.vmem [shape: f32[2,1,32], index: 6, kind: input, shape index: {}]
  %s7 = inlined_call_operand.vmem [shape: f32[2,1,32], index: 7, kind: input, shape index: {}]
  %s8 = inlined_call_operand.vmem [shape: f32[2,1,32], index: 8, kind: input, shape index: {}]
  %s9 = inlined_call_operand.vmem [shape: f32[2,32,64], index: 9, kind: input, shape index: {}]
  %s10 = inlined_call_operand.vmem [shape: f32[2,1,64], index: 10, kind: input, shape index: {}]
  %s11 = inlined_call_operand.vmem [shape: f32[2,64,32], index: 11, kind: input, shape index: {}]
  %s12 = inlined_call_operand.vmem [shape: f32[2,1,32], index: 12, kind: input, shape index: {}]
  %s13 = inlined_call_operand.vmem [shape: f32[2,1,32], index: 13, kind: input, shape index: {}]
  %s14 = inlined_call_operand.vmem [shape: f32[2,1,32], index: 14, kind: input, shape index: {}]
  %s15 = inlined_call_operand.vmem [shape: f32[32,128], index: 15, kind: input, shape index: {}]
  %s16 = inlined_call_operand.vmem [shape: f32[1,128], index: 16, kind: input, shape index: {}]
  %s17 = inlined_call_operand.hbm [shape: f32[2,128], index: 17, kind: output, shape index: {}]
  %s18 = sld [smem:[#allocation0]]
  $region78: #{transformer_forward.1} parent=0
    _
  %s20 = ssub.s32 1, %s18
  %s21 = scalar_select 0, %s20, %s18
  $region1: #{transformer_forward.1} parent=0
    #allocation2 [shape = 'u8[1024]{0}', space=vmem, size = 0x400, scoped, tag = 'output window, operand 0, single buffered']
    #allocation3 [shape = 's32[1]{0}', space=sflag, size = 0x4, scoped, tag = 'scoped memory for transformer_forward.1']
    %22 = vsyncpa [#allocation3], 0
    // Predicated region
    $region2: #{transformer_forward.1} parent=1 // pred_check
      _
    $region3: #{transformer_forward.1} parent=1 // pred_check_branch
      %24 = sbr.rel (0) target = $region5
    $region4: #{transformer_forward.1} parent=1 // pred_region
      _
    $region5: #{transformer_forward.1} parent=1 // pred_fallthru
      _
    // Predicated region
    $region6: #{transformer_forward.1} parent=1 // pred_check
      _
    $region7: #{transformer_forward.1} parent=1 // pred_check_branch
      %26 = sbr.rel (0) target = $region9
    $region8: #{transformer_forward.1} parent=1 // pred_region
      _
    $region9: #{transformer_forward.1} parent=1 // pred_fallthru
      _
    // Predicated region
    $region10: #{transformer_forward.1} parent=1 // pred_check
      _
    $region11: #{transformer_forward.1} parent=1 // pred_check_branch
      %28 = sbr.rel (0) target = $region13
    $region12: #{transformer_forward.1} parent=1 // pred_region
      _
    $region13: #{transformer_forward.1} parent=1 // pred_fallthru
      _
    // Predicated region
    $region14: #{transformer_forward.1} parent=1 // pred_check
      _
    $region15: #{transformer_forward.1} parent=1 // pred_check_branch
      %30 = sbr.rel (0) target = $region17
    $region16: #{transformer_forward.1} parent=1 // pred_region
      _
    $region17: #{transformer_forward.1} parent=1 // pred_fallthru
      _
    // Predicated region
    $region18: #{transformer_forward.1} parent=1 // pred_check
      _
    $region19: #{transformer_forward.1} parent=1 // pred_check_branch
      %32 = sbr.rel (0) target = $region21
    $region20: #{transformer_forward.1} parent=1 // pred_region
      _
    $region21: #{transformer_forward.1} parent=1 // pred_fallthru
      _
    // Predicated region
    $region22: #{transformer_forward.1} parent=1 // pred_check
      _
    $region23: #{transformer_forward.1} parent=1 // pred_check_branch
      %34 = sbr.rel (0) target = $region25
    $region24: #{transformer_forward.1} parent=1 // pred_region
      _
    $region25: #{transformer_forward.1} parent=1 // pred_fallthru
      _
    // Predicated region
    $region26: #{transformer_forward.1} parent=1 // pred_check
      _
    $region27: #{transformer_forward.1} parent=1 // pred_check_branch
      %36 = sbr.rel (0) target = $region29
    $region28: #{transformer_forward.1} parent=1 // pred_region
      _
    $region29: #{transformer_forward.1} parent=1 // pred_fallthru
      _
    // Predicated region
    $region30: #{transformer_forward.1} parent=1 // pred_check
      _
    $region31: #{transformer_forward.1} parent=1 // pred_check_branch
      %38 = sbr.rel (0) target = $region33
    $region32: #{transformer_forward.1} parent=1 // pred_region
      _
    $region33: #{transformer_forward.1} parent=1 // pred_fallthru
      _
    // Predicated region
    $region34: #{transformer_forward.1} parent=1 // pred_check
      _
    $region35: #{transformer_forward.1} parent=1 // pred_check_branch
      %40 = sbr.rel (0) target = $region37
    $region36: #{transformer_forward.1} parent=1 // pred_region
      _
    $region37: #{transformer_forward.1} parent=1 // pred_fallthru
      _
    // Predicated region
    $region38: #{transformer_forward.1} parent=1 // pred_check
      _
    $region39: #{transformer_forward.1} parent=1 // pred_check_branch
      %42 = sbr.rel (0) target = $region41
    $region40: #{transformer_forward.1} parent=1 // pred_region
      _
    $region41: #{transformer_forward.1} parent=1 // pred_fallthru
      _
    // Predicated region
    $region42: #{transformer_forward.1} parent=1 // pred_check
      _
    $region43: #{transformer_forward.1} parent=1 // pred_check_branch
      %44 = sbr.rel (0) target = $region45
    $region44: #{transformer_forward.1} parent=1 // pred_region
      _
    $region45: #{transformer_forward.1} parent=1 // pred_fallthru
      _
    // Predicated region
    $region46: #{transformer_forward.1} parent=1 // pred_check
      _
    $region47: #{transformer_forward.1} parent=1 // pred_check_branch
      %46 = sbr.rel (0) target = $region49
    $region48: #{transformer_forward.1} parent=1 // pred_region
      _
    $region49: #{transformer_forward.1} parent=1 // pred_fallthru
      _
    // Predicated region
    $region50: #{transformer_forward.1} parent=1 // pred_check
      _
    $region51: #{transformer_forward.1} parent=1 // pred_check_branch
      %48 = sbr.rel (0) target = $region53
    $region52: #{transformer_forward.1} parent=1 // pred_region
      _
    $region53: #{transformer_forward.1} parent=1 // pred_fallthru
      _
    // Predicated region
    $region54: #{transformer_forward.1} parent=1 // pred_check
      _
    $region55: #{transformer_forward.1} parent=1 // pred_check_branch
      %50 = sbr.rel (0) target = $region57
    $region56: #{transformer_forward.1} parent=1 // pred_region
      _
    $region57: #{transformer_forward.1} parent=1 // pred_fallthru
      _
    // Predicated region
    $region58: #{transformer_forward.1} parent=1 // pred_check
      _
    $region59: #{transformer_forward.1} parent=1 // pred_check_branch
      %52 = sbr.rel (0) target = $region61
    $region60: #{transformer_forward.1} parent=1 // pred_region
      _
    $region61: #{transformer_forward.1} parent=1 // pred_fallthru
      _
    // Predicated region
    $region62: #{transformer_forward.1} parent=1 // pred_check
      _
    $region63: #{transformer_forward.1} parent=1 // pred_check_branch
      %54 = sbr.rel (0) target = $region65
    $region64: #{transformer_forward.1} parent=1 // pred_region
      _
    $region65: #{transformer_forward.1} parent=1 // pred_fallthru
      _
    // Predicated region
    $region66: #{transformer_forward.1} parent=1 // pred_check
      _
    $region67: #{transformer_forward.1} parent=1 // pred_check_branch
      %56 = sbr.rel (0) target = $region69
    $region68: #{transformer_forward.1} parent=1 // pred_region
      _
    $region69: #{transformer_forward.1} parent=1 // pred_fallthru
      _
    %v57 = vld [vmem:[%s0] sm:$0xff]
    %v58 = vld [vmem:[%s0 + $0x8] sm:$0xff]
    %v59 = vld [vmem:[%s1] sm:$0x1]
    %v60 = vld [vmem:[%s2] sm:$0x1]
    %vm61 = vcmask 261120
    %v62 = vsel %vm61, %v57, 0.0
    %63 = vadd.xlane.f32.xlu0 %v62
    %v64 = vpop.xlane.xlu0 %63
    %v65 = vsel %vm61, %v58, 0.0
    %66 = vadd.xlane.f32.xlu0 %v65
    %v67 = vpop.xlane.xlu0 %66
    %v68 = vrcp.pop 32.0
    %v69 = vmul.f32 32.0, %v68
    %v70 = vsub.f32 1.0, %v69
    %v71 = vmul.f32 %v68, %v70
    %v72 = vadd.f32 %v68, %v71
    %vm73 = vweird.f32 %v68
    %v74 = vsel %vm73, %v68, %v72
    %v75 = vmul.f32 %v64, %v74
    %v76 = vmul.f32 %v67, %v74
    %v77 = vsub.f32 %v57, %v75
    %v78 = vsub.f32 %v58, %v76
    %v79 = vmul.f32 %v77, %v77
    %v80 = vmul.f32 %v78, %v78
    %v81 = vsel %vm61, %v79, 0.0
    %82 = vadd.xlane.f32.xlu0 %v81
    %v83 = vpop.xlane.xlu0 %82
    %v84 = vsel %vm61, %v80, 0.0
    %85 = vadd.xlane.f32.xlu0 %v84
    %v86 = vpop.xlane.xlu0 %85
    %v87 = vmul.f32 %v83, %v74
    %v88 = vmul.f32 %v86, %v74
    %v89 = vadd.f32 %v87, 1e-12
    %v90 = vadd.f32 %v88, 1e-12
    %v91 = vrsqrt.pop %v89
    %v92 = vmul.f32 %v91, %v89
    %v93 = vmul.f32 %v92, %v91
    %v94 = vmul.f32 0.5, %v93
    %v95 = vsub.f32 1.5, %v94
    %v96 = vmul.f32 %v91, %v95
    %vm97 = vweird.f32 %v89
    %vm98 = vweird.f32 %v91
    %vm99 = vmor %vm97, %vm98
    %v100 = vsel %vm99, %v91, %v96
    %v101 = vrsqrt.pop %v90
    %v102 = vmul.f32 %v101, %v90
    %v103 = vmul.f32 %v102, %v101
    %v104 = vmul.f32 0.5, %v103
    %v105 = vsub.f32 1.5, %v104
    %v106 = vmul.f32 %v101, %v105
    %vm107 = vweird.f32 %v90
    %vm108 = vweird.f32 %v101
    %vm109 = vmor %vm107, %vm108
    %v110 = vsel %vm109, %v101, %v106
    %v111 = vmul.f32 %v77, %v100
    %v112 = vmul.f32 %v78, %v110
    %v114 = vperm.slane %v59, 0
    %v116 = vmul.f32 %v111, %v114
    %v117 = vmul.f32 %v112, %v114
    %v119 = vperm.slane %v60, 0
    %v121 = vadd.f32 %v116, %v119
    %v122 = vadd.f32 %v117, %v119
    %v123 = vld [vmem:[%s3] sm:$0xff]
    %v124 = vld [vmem:[%s3 + $0x8] sm:$0xff]
    %v125 = vld [vmem:[%s3 + $0x10] sm:$0xff]
    %v126 = vld [vmem:[%s3 + $0x18] sm:$0xff]
    %v127 = vld [vmem:[%s4] sm:$0x1]
    %v129 = vperm.slane %v127, 0
    %v132 = vsel %vm61, %v121, 0
    %v135 = vsel %vm61, %v122, 0
    %137 = vmatpush.msra.mxu0 0.0
    %138 = vmatpush.msra.mxu0 0.0
    %139 = vmatpush.msra.mxu0 0.0
    %140 = vmatpush.msra.mxu0 0.0
    %141 = vmatpush.msra.mxu0 0.0
    %142 = vmatpush.msra.mxu0 0.0
    %143 = vmatpush.msra.mxu0 0.0
    %144 = vmatpush.msra.mxu0 0.0
    %145 = vmatpush.msra.mxu0 0.0
    %146 = vmatpush.msra.mxu0 0.0
    %147 = vmatpush.msra.mxu0 0.0
    %148 = vmatpush.msra.mxu0 0.0
    %149 = vmatpush.msra.mxu0 %v126
    %150 = vmatpush.msra.mxu0 %v125
    %151 = vmatpush.msra.mxu0 %v124
    %152 = vmatpush.msra.mxu0 %v123
    %153 = vmatmul.f32.gmra.mxu0 %v132
    %v154 = vpop.f32.mrf.mxu0
    %v155 = vadd.f32 %v129, %v154
    %156 = vmatmul.f32.gmra.mxu0 %v135
    %v157 = vpop.f32.mrf.mxu0
    %v158 = vadd.f32 %v129, %v157
    %159 = vdwg.mxu0
    %v160 = vmul.f32 %v155, 0.35355338
    %162 = vrot.lane.b32.xlu0 %v155, 96
    %v163 = vpop.permute.xlu0 %162
    %vm164 = vcmask 64512
    %v166 = vsel %vm164, %v160, 0
    %v168 = vsel %vm164, %v163, 0
    %170 = vmatpush.xpose.msra.mxu0 0.0
    %171 = vmatpush.xpose.msra.mxu0 0.0
    %172 = vmatpush.xpose.msra.mxu0 0.0
    %173 = vmatpush.xpose.msra.mxu0 0.0
    %174 = vmatpush.xpose.msra.mxu0 0.0
    %175 = vmatpush.xpose.msra.mxu0 0.0
    %176 = vmatpush.xpose.msra.mxu0 0.0
    %177 = vmatpush.xpose.msra.mxu0 0.0
    %178 = vmatpush.xpose.msra.mxu0 0.0
    %179 = vmatpush.xpose.msra.mxu0 0.0
    %180 = vmatpush.xpose.msra.mxu0 0.0
    %181 = vmatpush.xpose.msra.mxu0 0.0
    %182 = vmatpush.xpose.msra.mxu0 0.0
    %183 = vmatpush.xpose.msra.mxu0 0.0
    %184 = vmatpush.xpose.msra.mxu0 0.0
    %185 = vmatpush.xpose.msra.mxu0 %v168
    %186 = vmatmul.f32.gmra.mxu0 %v166
    %v187 = vpop.f32.mrf.mxu0
    %v188 = vadd.f32 0.0, %v187
    %189 = vdwg.mxu0
    %v190 = vsel %vm164, %v188, -inf
    %191 = vmax.xlane.f32.xlu0 %v190
    %v192 = vpop.xlane.xlu0 %191
    %v193 = vsub.f32 %v188, %v192
    %v194 = vmul.f32 %v193, 1.442695
    %v195 = vpow.pop %v194
    %v196 = vsel %vm164, %v195, 0.0
    %197 = vadd.xlane.f32.xlu0 %v196
    %v198 = vpop.xlane.xlu0 %197
    %v199 = vrcp.pop %v198
    %v200 = vmul.f32 %v195, %v199
    %201 = vrot.lane.b32.xlu0 %v155, 64
    %v202 = vpop.permute.xlu0 %201
    %v205 = vsel %vm164, %v200, 0
    %207 = vmatpush.msra.mxu0 0.0
    %208 = vmatpush.msra.mxu0 0.0
    %209 = vmatpush.msra.mxu0 0.0
    %210 = vmatpush.msra.mxu0 0.0
    %211 = vmatpush.msra.mxu0 0.0
    %212 = vmatpush.msra.mxu0 0.0
    %213 = vmatpush.msra.mxu0 0.0
    %214 = vmatpush.msra.mxu0 0.0
    %215 = vmatpush.msra.mxu0 0.0
    %216 = vmatpush.msra.mxu0 0.0
    %217 = vmatpush.msra.mxu0 0.0
    %218 = vmatpush.msra.mxu0 0.0
    %219 = vmatpush.msra.mxu0 0.0
    %220 = vmatpush.msra.mxu0 0.0
    %221 = vmatpush.msra.mxu0 0.0
    %222 = vmatpush.msra.mxu0 %v202
    %223 = vmatmul.f32.gmra.mxu0 %v205
    %v224 = vpop.f32.mrf.mxu0
    %v225 = vadd.f32 0.0, %v224
    %226 = vdwg.mxu0
    %227 = vrot.lane.b32.xlu0 %v160, 120
    %v228 = vpop.permute.xlu0 %227
    %229 = vrot.lane.b32.xlu0 %v155, 88
    %v230 = vpop.permute.xlu0 %229
    %v231 = vsel %vm164, %v228, 0
    %v233 = vsel %vm164, %v230, 0
    %235 = vmatpush.xpose.msra.mxu0 0.0
    %236 = vmatpush.xpose.msra.mxu0 0.0
    %237 = vmatpush.xpose.msra.mxu0 0.0
    %238 = vmatpush.xpose.msra.mxu0 0.0
    %239 = vmatpush.xpose.msra.mxu0 0.0
    %240 = vmatpush.xpose.msra.mxu0 0.0
    %241 = vmatpush.xpose.msra.mxu0 0.0
    %242 = vmatpush.xpose.msra.mxu0 0.0
    %243 = vmatpush.xpose.msra.mxu0 0.0
    %244 = vmatpush.xpose.msra.mxu0 0.0
    %245 = vmatpush.xpose.msra.mxu0 0.0
    %246 = vmatpush.xpose.msra.mxu0 0.0
    %247 = vmatpush.xpose.msra.mxu0 0.0
    %248 = vmatpush.xpose.msra.mxu0 0.0
    %249 = vmatpush.xpose.msra.mxu0 0.0
    %250 = vmatpush.xpose.msra.mxu0 %v233
    %251 = vmatmul.f32.gmra.mxu0 %v231
    %v252 = vpop.f32.mrf.mxu0
    %v253 = vadd.f32 0.0, %v252
    %254 = vdwg.mxu0
    %v255 = vsel %vm164, %v253, -inf
    %256 = vmax.xlane.f32.xlu0 %v255
    %v257 = vpop.xlane.xlu0 %256
    %v258 = vsub.f32 %v253, %v257
    %v259 = vmul.f32 %v258, 1.442695
    %v260 = vpow.pop %v259
    %v261 = vsel %vm164, %v260, 0.0
    %262 = vadd.xlane.f32.xlu0 %v261
    %v263 = vpop.xlane.xlu0 %262
    %v264 = vrcp.pop %v263
    %v265 = vmul.f32 %v260, %v264
    %266 = vrot.lane.b32.xlu0 %v155, 56
    %v267 = vpop.permute.xlu0 %266
    %v270 = vsel %vm164, %v265, 0
    %272 = vmatpush.msra.mxu0 0.0
    %273 = vmatpush.msra.mxu0 0.0
    %274 = vmatpush.msra.mxu0 0.0
    %275 = vmatpush.msra.mxu0 0.0
    %276 = vmatpush.msra.mxu0 0.0
    %277 = vmatpush.msra.mxu0 0.0
    %278 = vmatpush.msra.mxu0 0.0
    %279 = vmatpush.msra.mxu0 0.0
    %280 = vmatpush.msra.mxu0 0.0
    %281 = vmatpush.msra.mxu0 0.0
    %282 = vmatpush.msra.mxu0 0.0
    %283 = vmatpush.msra.mxu0 0.0
    %284 = vmatpush.msra.mxu0 0.0
    %285 = vmatpush.msra.mxu0 0.0
    %286 = vmatpush.msra.mxu0 0.0
    %287 = vmatpush.msra.mxu0 %v267
    %288 = vmatmul.f32.gmra.mxu0 %v270
    %v289 = vpop.f32.mrf.mxu0
    %v290 = vadd.f32 0.0, %v289
    %291 = vdwg.mxu0
    %292 = vrot.lane.b32.xlu0 %v160, 112
    %v293 = vpop.permute.xlu0 %292
    %294 = vrot.lane.b32.xlu0 %v155, 80
    %v295 = vpop.permute.xlu0 %294
    %v296 = vsel %vm164, %v293, 0
    %v298 = vsel %vm164, %v295, 0
    %300 = vmatpush.xpose.msra.mxu0 0.0
    %301 = vmatpush.xpose.msra.mxu0 0.0
    %302 = vmatpush.xpose.msra.mxu0 0.0
    %303 = vmatpush.xpose.msra.mxu0 0.0
    %304 = vmatpush.xpose.msra.mxu0 0.0
    %305 = vmatpush.xpose.msra.mxu0 0.0
    %306 = vmatpush.xpose.msra.mxu0 0.0
    %307 = vmatpush.xpose.msra.mxu0 0.0
    %308 = vmatpush.xpose.msra.mxu0 0.0
    %309 = vmatpush.xpose.msra.mxu0 0.0
    %310 = vmatpush.xpose.msra.mxu0 0.0
    %311 = vmatpush.xpose.msra.mxu0 0.0
    %312 = vmatpush.xpose.msra.mxu0 0.0
    %313 = vmatpush.xpose.msra.mxu0 0.0
    %314 = vmatpush.xpose.msra.mxu0 0.0
    %315 = vmatpush.xpose.msra.mxu0 %v298
    %316 = vmatmul.f32.gmra.mxu0 %v296
    %v317 = vpop.f32.mrf.mxu0
    %v318 = vadd.f32 0.0, %v317
    %319 = vdwg.mxu0
    %v320 = vsel %vm164, %v318, -inf
    %321 = vmax.xlane.f32.xlu0 %v320
    %v322 = vpop.xlane.xlu0 %321
    %v323 = vsub.f32 %v318, %v322
    %v324 = vmul.f32 %v323, 1.442695
    %v325 = vpow.pop %v324
    %v326 = vsel %vm164, %v325, 0.0
    %327 = vadd.xlane.f32.xlu0 %v326
    %v328 = vpop.xlane.xlu0 %327
    %v329 = vrcp.pop %v328
    %v330 = vmul.f32 %v325, %v329
    %331 = vrot.lane.b32.xlu0 %v155, 48
    %v332 = vpop.permute.xlu0 %331
    %v335 = vsel %vm164, %v330, 0
    %337 = vmatpush.msra.mxu0 0.0
    %338 = vmatpush.msra.mxu0 0.0
    %339 = vmatpush.msra.mxu0 0.0
    %340 = vmatpush.msra.mxu0 0.0
    %341 = vmatpush.msra.mxu0 0.0
    %342 = vmatpush.msra.mxu0 0.0
    %343 = vmatpush.msra.mxu0 0.0
    %344 = vmatpush.msra.mxu0 0.0
    %345 = vmatpush.msra.mxu0 0.0
    %346 = vmatpush.msra.mxu0 0.0
    %347 = vmatpush.msra.mxu0 0.0
    %348 = vmatpush.msra.mxu0 0.0
    %349 = vmatpush.msra.mxu0 0.0
    %350 = vmatpush.msra.mxu0 0.0
    %351 = vmatpush.msra.mxu0 0.0
    %352 = vmatpush.msra.mxu0 %v332
    %353 = vmatmul.f32.gmra.mxu0 %v335
    %v354 = vpop.f32.mrf.mxu0
    %v355 = vadd.f32 0.0, %v354
    %356 = vdwg.mxu0
    %357 = vrot.lane.b32.xlu0 %v160, 104
    %v358 = vpop.permute.xlu0 %357
    %359 = vrot.lane.b32.xlu0 %v155, 72
    %v360 = vpop.permute.xlu0 %359
    %v361 = vsel %vm164, %v358, 0
    %v363 = vsel %vm164, %v360, 0
    %365 = vmatpush.xpose.msra.mxu0 0.0
    %366 = vmatpush.xpose.msra.mxu0 0.0
    %367 = vmatpush.xpose.msra.mxu0 0.0
    %368 = vmatpush.xpose.msra.mxu0 0.0
    %369 = vmatpush.xpose.msra.mxu0 0.0
    %370 = vmatpush.xpose.msra.mxu0 0.0
    %371 = vmatpush.xpose.msra.mxu0 0.0
    %372 = vmatpush.xpose.msra.mxu0 0.0
    %373 = vmatpush.xpose.msra.mxu0 0.0
    %374 = vmatpush.xpose.msra.mxu0 0.0
    %375 = vmatpush.xpose.msra.mxu0 0.0
    %376 = vmatpush.xpose.msra.mxu0 0.0
    %377 = vmatpush.xpose.msra.mxu0 0.0
    %378 = vmatpush.xpose.msra.mxu0 0.0
    %379 = vmatpush.xpose.msra.mxu0 0.0
    %380 = vmatpush.xpose.msra.mxu0 %v363
    %381 = vmatmul.f32.gmra.mxu0 %v361
    %v382 = vpop.f32.mrf.mxu0
    %v383 = vadd.f32 0.0, %v382
    %384 = vdwg.mxu0
    %v385 = vsel %vm164, %v383, -inf
    %386 = vmax.xlane.f32.xlu0 %v385
    %v387 = vpop.xlane.xlu0 %386
    %v388 = vsub.f32 %v383, %v387
    %v389 = vmul.f32 %v388, 1.442695
    %v390 = vpow.pop %v389
    %v391 = vsel %vm164, %v390, 0.0
    %392 = vadd.xlane.f32.xlu0 %v391
    %v393 = vpop.xlane.xlu0 %392
    %v394 = vrcp.pop %v393
    %v395 = vmul.f32 %v390, %v394
    %396 = vrot.lane.b32.xlu0 %v155, 40
    %v397 = vpop.permute.xlu0 %396
    %v400 = vsel %vm164, %v395, 0
    %402 = vmatpush.msra.mxu0 0.0
    %403 = vmatpush.msra.mxu0 0.0
    %404 = vmatpush.msra.mxu0 0.0
    %405 = vmatpush.msra.mxu0 0.0
    %406 = vmatpush.msra.mxu0 0.0
    %407 = vmatpush.msra.mxu0 0.0
    %408 = vmatpush.msra.mxu0 0.0
    %409 = vmatpush.msra.mxu0 0.0
    %410 = vmatpush.msra.mxu0 0.0
    %411 = vmatpush.msra.mxu0 0.0
    %412 = vmatpush.msra.mxu0 0.0
    %413 = vmatpush.msra.mxu0 0.0
    %414 = vmatpush.msra.mxu0 0.0
    %415 = vmatpush.msra.mxu0 0.0
    %416 = vmatpush.msra.mxu0 0.0
    %417 = vmatpush.msra.mxu0 %v397
    %418 = vmatmul.f32.gmra.mxu0 %v400
    %v419 = vpop.f32.mrf.mxu0
    %v420 = vadd.f32 0.0, %v419
    %421 = vdwg.mxu0
    %423 = vrot.lane.b32.xlu0 %v290, 8
    %v424 = vpop.permute.xlu0 %423
    %427 = vrot.lane.b32.xlu0 %v355, 16
    %v428 = vpop.permute.xlu0 %427
    %431 = vrot.lane.b32.xlu0 %v420, 24
    %v432 = vpop.permute.xlu0 %431
    %v434 = vsel %vm164, %v225, %v424
    %vm435 = vcmask 130048
    %v436 = vsel %vm435, %v434, %v428
    %vm437 = vcmask 195584
    %v438 = vsel %vm437, %v436, %v432
    %v439 = vmul.f32 %v158, 0.35355338
    %441 = vrot.lane.b32.xlu0 %v158, 96
    %v442 = vpop.permute.xlu0 %441
    %v444 = vsel %vm164, %v439, 0
    %v446 = vsel %vm164, %v442, 0
    %448 = vmatpush.xpose.msra.mxu0 0.0
    %449 = vmatpush.xpose.msra.mxu0 0.0
    %450 = vmatpush.xpose.msra.mxu0 0.0
    %451 = vmatpush.xpose.msra.mxu0 0.0
    %452 = vmatpush.xpose.msra.mxu0 0.0
    %453 = vmatpush.xpose.msra.mxu0 0.0
    %454 = vmatpush.xpose.msra.mxu0 0.0
    %455 = vmatpush.xpose.msra.mxu0 0.0
    %456 = vmatpush.xpose.msra.mxu0 0.0
    %457 = vmatpush.xpose.msra.mxu0 0.0
    %458 = vmatpush.xpose.msra.mxu0 0.0
    %459 = vmatpush.xpose.msra.mxu0 0.0
    %460 = vmatpush.xpose.msra.mxu0 0.0
    %461 = vmatpush.xpose.msra.mxu0 0.0
    %462 = vmatpush.xpose.msra.mxu0 0.0
    %463 = vmatpush.xpose.msra.mxu0 %v446
    %464 = vmatmul.f32.gmra.mxu0 %v444
    %v465 = vpop.f32.mrf.mxu0
    %v466 = vadd.f32 0.0, %v465
    %467 = vdwg.mxu0
    %v468 = vsel %vm164, %v466, -inf
    %469 = vmax.xlane.f32.xlu0 %v468
    %v470 = vpop.xlane.xlu0 %469
    %v471 = vsub.f32 %v466, %v470
    %v472 = vmul.f32 %v471, 1.442695
    %v473 = vpow.pop %v472
    %v474 = vsel %vm164, %v473, 0.0
    %475 = vadd.xlane.f32.xlu0 %v474
    %v476 = vpop.xlane.xlu0 %475
    %v477 = vrcp.pop %v476
    %v478 = vmul.f32 %v473, %v477
    %479 = vrot.lane.b32.xlu0 %v158, 64
    %v480 = vpop.permute.xlu0 %479
    %v483 = vsel %vm164, %v478, 0
    %485 = vmatpush.msra.mxu0 0.0
    %486 = vmatpush.msra.mxu0 0.0
    %487 = vmatpush.msra.mxu0 0.0
    %488 = vmatpush.msra.mxu0 0.0
    %489 = vmatpush.msra.mxu0 0.0
    %490 = vmatpush.msra.mxu0 0.0
    %491 = vmatpush.msra.mxu0 0.0
    %492 = vmatpush.msra.mxu0 0.0
    %493 = vmatpush.msra.mxu0 0.0
    %494 = vmatpush.msra.mxu0 0.0
    %495 = vmatpush.msra.mxu0 0.0
    %496 = vmatpush.msra.mxu0 0.0
    %497 = vmatpush.msra.mxu0 0.0
    %498 = vmatpush.msra.mxu0 0.0
    %499 = vmatpush.msra.mxu0 0.0
    %500 = vmatpush.msra.mxu0 %v480
    %501 = vmatmul.f32.gmra.mxu0 %v483
    %v502 = vpop.f32.mrf.mxu0
    %v503 = vadd.f32 0.0, %v502
    %504 = vdwg.mxu0
    %505 = vrot.lane.b32.xlu0 %v439, 120
    %v506 = vpop.permute.xlu0 %505
    %507 = vrot.lane.b32.xlu0 %v158, 88
    %v508 = vpop.permute.xlu0 %507
    %v509 = vsel %vm164, %v506, 0
    %v511 = vsel %vm164, %v508, 0
    %513 = vmatpush.xpose.msra.mxu0 0.0
    %514 = vmatpush.xpose.msra.mxu0 0.0
    %515 = vmatpush.xpose.msra.mxu0 0.0
    %516 = vmatpush.xpose.msra.mxu0 0.0
    %517 = vmatpush.xpose.msra.mxu0 0.0
    %518 = vmatpush.xpose.msra.mxu0 0.0
    %519 = vmatpush.xpose.msra.mxu0 0.0
    %520 = vmatpush.xpose.msra.mxu0 0.0
    %521 = vmatpush.xpose.msra.mxu0 0.0
    %522 = vmatpush.xpose.msra.mxu0 0.0
    %523 = vmatpush.xpose.msra.mxu0 0.0
    %524 = vmatpush.xpose.msra.mxu0 0.0
    %525 = vmatpush.xpose.msra.mxu0 0.0
    %526 = vmatpush.xpose.msra.mxu0 0.0
    %527 = vmatpush.xpose.msra.mxu0 0.0
    %528 = vmatpush.xpose.msra.mxu0 %v511
    %529 = vmatmul.f32.gmra.mxu0 %v509
    %v530 = vpop.f32.mrf.mxu0
    %v531 = vadd.f32 0.0, %v530
    %532 = vdwg.mxu0
    %v533 = vsel %vm164, %v531, -inf
    %534 = vmax.xlane.f32.xlu0 %v533
    %v535 = vpop.xlane.xlu0 %534
    %v536 = vsub.f32 %v531, %v535
    %v537 = vmul.f32 %v536, 1.442695
    %v538 = vpow.pop %v537
    %v539 = vsel %vm164, %v538, 0.0
    %540 = vadd.xlane.f32.xlu0 %v539
    %v541 = vpop.xlane.xlu0 %540
    %v542 = vrcp.pop %v541
    %v543 = vmul.f32 %v538, %v542
    %544 = vrot.lane.b32.xlu0 %v158, 56
    %v545 = vpop.permute.xlu0 %544
    %v548 = vsel %vm164, %v543, 0
    %550 = vmatpush.msra.mxu0 0.0
    %551 = vmatpush.msra.mxu0 0.0
    %552 = vmatpush.msra.mxu0 0.0
    %553 = vmatpush.msra.mxu0 0.0
    %554 = vmatpush.msra.mxu0 0.0
    %555 = vmatpush.msra.mxu0 0.0
    %556 = vmatpush.msra.mxu0 0.0
    %557 = vmatpush.msra.mxu0 0.0
    %558 = vmatpush.msra.mxu0 0.0
    %559 = vmatpush.msra.mxu0 0.0
    %560 = vmatpush.msra.mxu0 0.0
    %561 = vmatpush.msra.mxu0 0.0
    %562 = vmatpush.msra.mxu0 0.0
    %563 = vmatpush.msra.mxu0 0.0
    %564 = vmatpush.msra.mxu0 0.0
    %565 = vmatpush.msra.mxu0 %v545
    %566 = vmatmul.f32.gmra.mxu0 %v548
    %v567 = vpop.f32.mrf.mxu0
    %v568 = vadd.f32 0.0, %v567
    %569 = vdwg.mxu0
    %570 = vrot.lane.b32.xlu0 %v439, 112
    %v571 = vpop.permute.xlu0 %570
    %572 = vrot.lane.b32.xlu0 %v158, 80
    %v573 = vpop.permute.xlu0 %572
    %v574 = vsel %vm164, %v571, 0
    %v576 = vsel %vm164, %v573, 0
    %578 = vmatpush.xpose.msra.mxu0 0.0
    %579 = vmatpush.xpose.msra.mxu0 0.0
    %580 = vmatpush.xpose.msra.mxu0 0.0
    %581 = vmatpush.xpose.msra.mxu0 0.0
    %582 = vmatpush.xpose.msra.mxu0 0.0
    %583 = vmatpush.xpose.msra.mxu0 0.0
    %584 = vmatpush.xpose.msra.mxu0 0.0
    %585 = vmatpush.xpose.msra.mxu0 0.0
    %586 = vmatpush.xpose.msra.mxu0 0.0
    %587 = vmatpush.xpose.msra.mxu0 0.0
    %588 = vmatpush.xpose.msra.mxu0 0.0
    %589 = vmatpush.xpose.msra.mxu0 0.0
    %590 = vmatpush.xpose.msra.mxu0 0.0
    %591 = vmatpush.xpose.msra.mxu0 0.0
    %592 = vmatpush.xpose.msra.mxu0 0.0
    %593 = vmatpush.xpose.msra.mxu0 %v576
    %594 = vmatmul.f32.gmra.mxu0 %v574
    %v595 = vpop.f32.mrf.mxu0
    %v596 = vadd.f32 0.0, %v595
    %597 = vdwg.mxu0
    %v598 = vsel %vm164, %v596, -inf
    %599 = vmax.xlane.f32.xlu0 %v598
    %v600 = vpop.xlane.xlu0 %599
    %v601 = vsub.f32 %v596, %v600
    %v602 = vmul.f32 %v601, 1.442695
    %v603 = vpow.pop %v602
    %v604 = vsel %vm164, %v603, 0.0
    %605 = vadd.xlane.f32.xlu0 %v604
    %v606 = vpop.xlane.xlu0 %605
    %v607 = vrcp.pop %v606
    %v608 = vmul.f32 %v603, %v607
    %609 = vrot.lane.b32.xlu0 %v158, 48
    %v610 = vpop.permute.xlu0 %609
    %v613 = vsel %vm164, %v608, 0
    %615 = vmatpush.msra.mxu0 0.0
    %616 = vmatpush.msra.mxu0 0.0
    %617 = vmatpush.msra.mxu0 0.0
    %618 = vmatpush.msra.mxu0 0.0
    %619 = vmatpush.msra.mxu0 0.0
    %620 = vmatpush.msra.mxu0 0.0
    %621 = vmatpush.msra.mxu0 0.0
    %622 = vmatpush.msra.mxu0 0.0
    %623 = vmatpush.msra.mxu0 0.0
    %624 = vmatpush.msra.mxu0 0.0
    %625 = vmatpush.msra.mxu0 0.0
    %626 = vmatpush.msra.mxu0 0.0
    %627 = vmatpush.msra.mxu0 0.0
    %628 = vmatpush.msra.mxu0 0.0
    %629 = vmatpush.msra.mxu0 0.0
    %630 = vmatpush.msra.mxu0 %v610
    %631 = vmatmul.f32.gmra.mxu0 %v613
    %v632 = vpop.f32.mrf.mxu0
    %v633 = vadd.f32 0.0, %v632
    %634 = vdwg.mxu0
    %635 = vrot.lane.b32.xlu0 %v439, 104
    %v636 = vpop.permute.xlu0 %635
    %637 = vrot.lane.b32.xlu0 %v158, 72
    %v638 = vpop.permute.xlu0 %637
    %v639 = vsel %vm164, %v636, 0
    %v641 = vsel %vm164, %v638, 0
    %643 = vmatpush.xpose.msra.mxu0 0.0
    %644 = vmatpush.xpose.msra.mxu0 0.0
    %645 = vmatpush.xpose.msra.mxu0 0.0
    %646 = vmatpush.xpose.msra.mxu0 0.0
    %647 = vmatpush.xpose.msra.mxu0 0.0
    %648 = vmatpush.xpose.msra.mxu0 0.0
    %649 = vmatpush.xpose.msra.mxu0 0.0
    %650 = vmatpush.xpose.msra.mxu0 0.0
    %651 = vmatpush.xpose.msra.mxu0 0.0
    %652 = vmatpush.xpose.msra.mxu0 0.0
    %653 = vmatpush.xpose.msra.mxu0 0.0
    %654 = vmatpush.xpose.msra.mxu0 0.0
    %655 = vmatpush.xpose.msra.mxu0 0.0
    %656 = vmatpush.xpose.msra.mxu0 0.0
    %657 = vmatpush.xpose.msra.mxu0 0.0
    %658 = vmatpush.xpose.msra.mxu0 %v641
    %659 = vmatmul.f32.gmra.mxu0 %v639
    %v660 = vpop.f32.mrf.mxu0
    %v661 = vadd.f32 0.0, %v660
    %662 = vdwg.mxu0
    %v663 = vsel %vm164, %v661, -inf
    %664 = vmax.xlane.f32.xlu0 %v663
    %v665 = vpop.xlane.xlu0 %664
    %v666 = vsub.f32 %v661, %v665
    %v667 = vmul.f32 %v666, 1.442695
    %v668 = vpow.pop %v667
    %v669 = vsel %vm164, %v668, 0.0
    %670 = vadd.xlane.f32.xlu0 %v669
    %v671 = vpop.xlane.xlu0 %670
    %v672 = vrcp.pop %v671
    %v673 = vmul.f32 %v668, %v672
    %674 = vrot.lane.b32.xlu0 %v158, 40
    %v675 = vpop.permute.xlu0 %674
    %v678 = vsel %vm164, %v673, 0
    %680 = vmatpush.msra.mxu0 0.0
    %681 = vmatpush.msra.mxu0 0.0
    %682 = vmatpush.msra.mxu0 0.0
    %683 = vmatpush.msra.mxu0 0.0
    %684 = vmatpush.msra.mxu0 0.0
    %685 = vmatpush.msra.mxu0 0.0
    %686 = vmatpush.msra.mxu0 0.0
    %687 = vmatpush.msra.mxu0 0.0
    %688 = vmatpush.msra.mxu0 0.0
    %689 = vmatpush.msra.mxu0 0.0
    %690 = vmatpush.msra.mxu0 0.0
    %691 = vmatpush.msra.mxu0 0.0
    %692 = vmatpush.msra.mxu0 0.0
    %693 = vmatpush.msra.mxu0 0.0
    %694 = vmatpush.msra.mxu0 0.0
    %695 = vmatpush.msra.mxu0 %v675
    %696 = vmatmul.f32.gmra.mxu0 %v678
    %v697 = vpop.f32.mrf.mxu0
    %v698 = vadd.f32 0.0, %v697
    %699 = vdwg.mxu0
    %701 = vrot.lane.b32.xlu0 %v568, 8
    %v702 = vpop.permute.xlu0 %701
    %705 = vrot.lane.b32.xlu0 %v633, 16
    %v706 = vpop.permute.xlu0 %705
    %709 = vrot.lane.b32.xlu0 %v698, 24
    %v710 = vpop.permute.xlu0 %709
    %v712 = vsel %vm164, %v503, %v702
    %v713 = vsel %vm435, %v712, %v706
    %v714 = vsel %vm437, %v713, %v710
    %v715 = vld [vmem:[%s5] sm:$0xff]
    %v716 = vld [vmem:[%s5 + $0x8] sm:$0xff]
    %v717 = vld [vmem:[%s5 + $0x10] sm:$0xff]
    %v718 = vld [vmem:[%s5 + $0x18] sm:$0xff]
    %v719 = vld [vmem:[%s6] sm:$0x1]
    %v721 = vperm.slane %v719, 0
    %v724 = vsel %vm61, %v438, 0
    %v727 = vsel %vm61, %v714, 0
    %729 = vmatpush.msra.mxu0 0.0
    %730 = vmatpush.msra.mxu0 0.0
    %731 = vmatpush.msra.mxu0 0.0
    %732 = vmatpush.msra.mxu0 0.0
    %733 = vmatpush.msra.mxu0 0.0
    %734 = vmatpush.msra.mxu0 0.0
    %735 = vmatpush.msra.mxu0 0.0
    %736 = vmatpush.msra.mxu0 0.0
    %737 = vmatpush.msra.mxu0 0.0
    %738 = vmatpush.msra.mxu0 0.0
    %739 = vmatpush.msra.mxu0 0.0
    %740 = vmatpush.msra.mxu0 0.0
    %741 = vmatpush.msra.mxu0 %v718
    %742 = vmatpush.msra.mxu0 %v717
    %743 = vmatpush.msra.mxu0 %v716
    %744 = vmatpush.msra.mxu0 %v715
    %745 = vmatmul.f32.gmra.mxu0 %v724
    %v746 = vpop.f32.mrf.mxu0
    %v747 = vadd.f32 %v721, %v746
    %748 = vmatmul.f32.gmra.mxu0 %v727
    %v749 = vpop.f32.mrf.mxu0
    %v750 = vadd.f32 %v721, %v749
    %751 = vdwg.mxu0
    %v752 = vadd.f32 %v121, %v747
    %v753 = vadd.f32 %v122, %v750
    %v754 = vld [vmem:[%s7] sm:$0x1]
    %v755 = vld [vmem:[%s8] sm:$0x1]
    %v756 = vsel %vm61, %v752, 0.0
    %757 = vadd.xlane.f32.xlu0 %v756
    %v758 = vpop.xlane.xlu0 %757
    %v759 = vsel %vm61, %v753, 0.0
    %760 = vadd.xlane.f32.xlu0 %v759
    %v761 = vpop.xlane.xlu0 %760
    %v762 = vmul.f32 %v758, %v74
    %v763 = vmul.f32 %v761, %v74
    %v764 = vsub.f32 %v752, %v762
    %v765 = vsub.f32 %v753, %v763
    %v766 = vmul.f32 %v764, %v764
    %v767 = vmul.f32 %v765, %v765
    %v768 = vsel %vm61, %v766, 0.0
    %769 = vadd.xlane.f32.xlu0 %v768
    %v770 = vpop.xlane.xlu0 %769
    %v771 = vsel %vm61, %v767, 0.0
    %772 = vadd.xlane.f32.xlu0 %v771
    %v773 = vpop.xlane.xlu0 %772
    %v774 = vmul.f32 %v770, %v74
    %v775 = vmul.f32 %v773, %v74
    %v776 = vadd.f32 %v774, 1e-12
    %v777 = vadd.f32 %v775, 1e-12
    %v778 = vrsqrt.pop %v776
    %v779 = vmul.f32 %v778, %v776
    %v780 = vmul.f32 %v779, %v778
    %v781 = vmul.f32 0.5, %v780
    %v782 = vsub.f32 1.5, %v781
    %v783 = vmul.f32 %v778, %v782
    %vm784 = vweird.f32 %v776
    %vm785 = vweird.f32 %v778
    %vm786 = vmor %vm784, %vm785
    %v787 = vsel %vm786, %v778, %v783
    %v788 = vrsqrt.pop %v777
    %v789 = vmul.f32 %v788, %v777
    %v790 = vmul.f32 %v789, %v788
    %v791 = vmul.f32 0.5, %v790
    %v792 = vsub.f32 1.5, %v791
    %v793 = vmul.f32 %v788, %v792
    %vm794 = vweird.f32 %v777
    %vm795 = vweird.f32 %v788
    %vm796 = vmor %vm794, %vm795
    %v797 = vsel %vm796, %v788, %v793
    %v798 = vmul.f32 %v764, %v787
    %v799 = vmul.f32 %v765, %v797
    %v801 = vperm.slane %v754, 0
    %v803 = vmul.f32 %v798, %v801
    %v804 = vmul.f32 %v799, %v801
    %v806 = vperm.slane %v755, 0
    %v808 = vadd.f32 %v803, %v806
    %v809 = vadd.f32 %v804, %v806
    %v810 = vld [vmem:[%s9] sm:$0xff]
    %v811 = vld [vmem:[%s9 + $0x8] sm:$0xff]
    %v812 = vld [vmem:[%s9 + $0x10] sm:$0xff]
    %v813 = vld [vmem:[%s9 + $0x18] sm:$0xff]
    %v814 = vld [vmem:[%s10] sm:$0x1]
    %v816 = vperm.slane %v814, 0
    %v819 = vsel %vm61, %v808, 0
    %v822 = vsel %vm61, %v809, 0
    %824 = vmatpush.msra.mxu0 0.0
    %825 = vmatpush.msra.mxu0 0.0
    %826 = vmatpush.msra.mxu0 0.0
    %827 = vmatpush.msra.mxu0 0.0
    %828 = vmatpush.msra.mxu0 0.0
    %829 = vmatpush.msra.mxu0 0.0
    %830 = vmatpush.msra.mxu0 0.0
    %831 = vmatpush.msra.mxu0 0.0
    %832 = vmatpush.msra.mxu0 0.0
    %833 = vmatpush.msra.mxu0 0.0
    %834 = vmatpush.msra.mxu0 0.0
    %835 = vmatpush.msra.mxu0 0.0
    %836 = vmatpush.msra.mxu0 %v813
    %837 = vmatpush.msra.mxu0 %v812
    %838 = vmatpush.msra.mxu0 %v811
    %839 = vmatpush.msra.mxu0 %v810
    %840 = vmatmul.f32.gmra.mxu0 %v819
    %v841 = vpop.f32.mrf.mxu0
    %v842 = vadd.f32 %v816, %v841
    %843 = vmatmul.f32.gmra.mxu0 %v822
    %v844 = vpop.f32.mrf.mxu0
    %v845 = vadd.f32 %v816, %v844
    %846 = vdwg.mxu0
    %v847 = vmul.f32 %v842, %v842
    %v848 = vmul.f32 %v845, %v845
    %v849 = vmul.f32 %v842, %v847
    %v850 = vmul.f32 %v845, %v848
    %v851 = vmul.f32 %v849, 0.044715
    %v852 = vmul.f32 %v850, 0.044715
    %v853 = vadd.f32 %v842, %v851
    %v854 = vadd.f32 %v845, %v852
    %v855 = vmul.f32 %v853, 0.7978846
    %v856 = vmul.f32 %v854, 0.7978846
    %v857 = vtanh.pop %v855
    %v858 = vtanh.pop %v856
    %v859 = vadd.f32 %v857, 1.0
    %v860 = vadd.f32 %v858, 1.0
    %v861 = vmul.f32 %v859, 0.5
    %v862 = vmul.f32 %v860, 0.5
    %v863 = vmul.f32 %v842, %v861
    %v864 = vmul.f32 %v845, %v862
    %v865 = vld [vmem:[%s11] sm:$0xff]
    %v866 = vld [vmem:[%s11 + $0x8] sm:$0xff]
    %v867 = vld [vmem:[%s11 + $0x10] sm:$0xff]
    %v868 = vld [vmem:[%s11 + $0x18] sm:$0xff]
    %v869 = vld [vmem:[%s11 + $0x20] sm:$0xff]
    %v870 = vld [vmem:[%s11 + $0x28] sm:$0xff]
    %v871 = vld [vmem:[%s11 + $0x30] sm:$0xff]
    %v872 = vld [vmem:[%s11 + $0x38] sm:$0xff]
    %v873 = vld [vmem:[%s12] sm:$0x1]
    %v875 = vperm.slane %v873, 0
    %vm877 = vcmask 523264
    %v879 = vsel %vm877, %v863, 0
    %v882 = vsel %vm877, %v864, 0
    %884 = vmatpush.msra.mxu0 0.0
    %885 = vmatpush.msra.mxu0 0.0
    %886 = vmatpush.msra.mxu0 0.0
    %887 = vmatpush.msra.mxu0 0.0
    %888 = vmatpush.msra.mxu0 0.0
    %889 = vmatpush.msra.mxu0 0.0
    %890 = vmatpush.msra.mxu0 0.0
    %891 = vmatpush.msra.mxu0 0.0
    %892 = vmatpush.msra.mxu0 %v872
    %893 = vmatpush.msra.mxu0 %v871
    %894 = vmatpush.msra.mxu0 %v870
    %895 = vmatpush.msra.mxu0 %v869
    %896 = vmatpush.msra.mxu0 %v868
    %897 = vmatpush.msra.mxu0 %v867
    %898 = vmatpush.msra.mxu0 %v866
    %899 = vmatpush.msra.mxu0 %v865
    %900 = vmatmul.f32.gmra.mxu0 %v879
    %v901 = vpop.f32.mrf.mxu0
    %v902 = vadd.f32 %v875, %v901
    %903 = vmatmul.f32.gmra.mxu0 %v882
    %v904 = vpop.f32.mrf.mxu0
    %v905 = vadd.f32 %v875, %v904
    %906 = vdwg.mxu0
    %v907 = vadd.f32 %v808, %v902
    %v908 = vadd.f32 %v809, %v905
    %v909 = vld [vmem:[%s13] sm:$0x1]
    %v910 = vld [vmem:[%s14] sm:$0x1]
    %v911 = vsel %vm61, %v907, 0.0
    %912 = vadd.xlane.f32.xlu0 %v911
    %v913 = vpop.xlane.xlu0 %912
    %v914 = vsel %vm61, %v908, 0.0
    %915 = vadd.xlane.f32.xlu0 %v914
    %v916 = vpop.xlane.xlu0 %915
    %v917 = vmul.f32 %v913, %v74
    %v918 = vmul.f32 %v916, %v74
    %v919 = vsub.f32 %v907, %v917
    %v920 = vsub.f32 %v908, %v918
    %v921 = vmul.f32 %v919, %v919
    %v922 = vmul.f32 %v920, %v920
    %v923 = vsel %vm61, %v921, 0.0
    %924 = vadd.xlane.f32.xlu0 %v923
    %v925 = vpop.xlane.xlu0 %924
    %v926 = vsel %vm61, %v922, 0.0
    %927 = vadd.xlane.f32.xlu0 %v926
    %v928 = vpop.xlane.xlu0 %927
    %v929 = vmul.f32 %v925, %v74
    %v930 = vmul.f32 %v928, %v74
    %v931 = vadd.f32 %v929, 1e-12
    %v932 = vadd.f32 %v930, 1e-12
    %v933 = vrsqrt.pop %v931
    %v934 = vmul.f32 %v933, %v931
    %v935 = vmul.f32 %v934, %v933
    %v936 = vmul.f32 0.5, %v935
    %v937 = vsub.f32 1.5, %v936
    %v938 = vmul.f32 %v933, %v937
    %vm939 = vweird.f32 %v931
    %vm940 = vweird.f32 %v933
    %vm941 = vmor %vm939, %vm940
    %v942 = vsel %vm941, %v933, %v938
    %v943 = vrsqrt.pop %v932
    %v944 = vmul.f32 %v943, %v932
    %v945 = vmul.f32 %v944, %v943
    %v946 = vmul.f32 0.5, %v945
    %v947 = vsub.f32 1.5, %v946
    %v948 = vmul.f32 %v943, %v947
    %vm949 = vweird.f32 %v932
    %vm950 = vweird.f32 %v943
    %vm951 = vmor %vm949, %vm950
    %v952 = vsel %vm951, %v943, %v948
    %v953 = vmul.f32 %v919, %v942
    %v954 = vmul.f32 %v920, %v952
    %v956 = vperm.slane %v909, 0
    %v958 = vmul.f32 %v953, %v956
    %v959 = vmul.f32 %v954, %v956
    %v961 = vperm.slane %v910, 0
    %v963 = vadd.f32 %v958, %v961
    %v964 = vadd.f32 %v959, %v961
    %s965 = scalar_lea.vmem %s3, 32
    %v966 = vld [vmem:[%s965] sm:$0xff]
    %v967 = vld [vmem:[%s965 + $0x8] sm:$0xff]
    %v968 = vld [vmem:[%s965 + $0x10] sm:$0xff]
    %v969 = vld [vmem:[%s965 + $0x18] sm:$0xff]
    %s970 = scalar_lea.vmem %s4, 1
    %v971 = vld [vmem:[%s970] sm:$0x1]
    %v973 = vperm.slane %v971, 0
    %v976 = vsel %vm61, %v963, 0
    %v979 = vsel %vm61, %v964, 0
    %981 = vmatpush.msra.mxu0 0.0
    %982 = vmatpush.msra.mxu0 0.0
    %983 = vmatpush.msra.mxu0 0.0
    %984 = vmatpush.msra.mxu0 0.0
    %985 = vmatpush.msra.mxu0 0.0
    %986 = vmatpush.msra.mxu0 0.0
    %987 = vmatpush.msra.mxu0 0.0
    %988 = vmatpush.msra.mxu0 0.0
    %989 = vmatpush.msra.mxu0 0.0
    %990 = vmatpush.msra.mxu0 0.0
    %991 = vmatpush.msra.mxu0 0.0
    %992 = vmatpush.msra.mxu0 0.0
    %993 = vmatpush.msra.mxu0 %v969
    %994 = vmatpush.msra.mxu0 %v968
    %995 = vmatpush.msra.mxu0 %v967
    %996 = vmatpush.msra.mxu0 %v966
    %997 = vmatmul.f32.gmra.mxu0 %v976
    %v998 = vpop.f32.mrf.mxu0
    %v999 = vadd.f32 %v973, %v998
    %1000 = vmatmul.f32.gmra.mxu0 %v979
    %v1001 = vpop.f32.mrf.mxu0
    %v1002 = vadd.f32 %v973, %v1001
    %1003 = vdwg.mxu0
    %v1004 = vmul.f32 %v999, 0.35355338
    %1006 = vrot.lane.b32.xlu0 %v999, 96
    %v1007 = vpop.permute.xlu0 %1006
    %v1009 = vsel %vm164, %v1004, 0
    %v1011 = vsel %vm164, %v1007, 0
    %1013 = vmatpush.xpose.msra.mxu0 0.0
    %1014 = vmatpush.xpose.msra.mxu0 0.0
    %1015 = vmatpush.xpose.msra.mxu0 0.0
    %1016 = vmatpush.xpose.msra.mxu0 0.0
    %1017 = vmatpush.xpose.msra.mxu0 0.0
    %1018 = vmatpush.xpose.msra.mxu0 0.0
    %1019 = vmatpush.xpose.msra.mxu0 0.0
    %1020 = vmatpush.xpose.msra.mxu0 0.0
    %1021 = vmatpush.xpose.msra.mxu0 0.0
    %1022 = vmatpush.xpose.msra.mxu0 0.0
    %1023 = vmatpush.xpose.msra.mxu0 0.0
    %1024 = vmatpush.xpose.msra.mxu0 0.0
    %1025 = vmatpush.xpose.msra.mxu0 0.0
    %1026 = vmatpush.xpose.msra.mxu0 0.0
    %1027 = vmatpush.xpose.msra.mxu0 0.0
    %1028 = vmatpush.xpose.msra.mxu0 %v1011
    %1029 = vmatmul.f32.gmra.mxu0 %v1009
    %v1030 = vpop.f32.mrf.mxu0
    %v1031 = vadd.f32 0.0, %v1030
    %1032 = vdwg.mxu0
    %v1033 = vsel %vm164, %v1031, -inf
    %1034 = vmax.xlane.f32.xlu0 %v1033
    %v1035 = vpop.xlane.xlu0 %1034
    %v1036 = vsub.f32 %v1031, %v1035
    %v1037 = vmul.f32 %v1036, 1.442695
    %v1038 = vpow.pop %v1037
    %v1039 = vsel %vm164, %v1038, 0.0
    %1040 = vadd.xlane.f32.xlu0 %v1039
    %v1041 = vpop.xlane.xlu0 %1040
    %v1042 = vrcp.pop %v1041
    %v1043 = vmul.f32 %v1038, %v1042
    %1044 = vrot.lane.b32.xlu0 %v999, 64
    %v1045 = vpop.permute.xlu0 %1044
    %v1048 = vsel %vm164, %v1043, 0
    %1050 = vmatpush.msra.mxu0 0.0
    %1051 = vmatpush.msra.mxu0 0.0
    %1052 = vmatpush.msra.mxu0 0.0
    %1053 = vmatpush.msra.mxu0 0.0
    %1054 = vmatpush.msra.mxu0 0.0
    %1055 = vmatpush.msra.mxu0 0.0
    %1056 = vmatpush.msra.mxu0 0.0
    %1057 = vmatpush.msra.mxu0 0.0
    %1058 = vmatpush.msra.mxu0 0.0
    %1059 = vmatpush.msra.mxu0 0.0
    %1060 = vmatpush.msra.mxu0 0.0
    %1061 = vmatpush.msra.mxu0 0.0
    %1062 = vmatpush.msra.mxu0 0.0
    %1063 = vmatpush.msra.mxu0 0.0
    %1064 = vmatpush.msra.mxu0 0.0
    %1065 = vmatpush.msra.mxu0 %v1045
    %1066 = vmatmul.f32.gmra.mxu0 %v1048
    %v1067 = vpop.f32.mrf.mxu0
    %v1068 = vadd.f32 0.0, %v1067
    %1069 = vdwg.mxu0
    %1070 = vrot.lane.b32.xlu0 %v1004, 120
    %v1071 = vpop.permute.xlu0 %1070
    %1072 = vrot.lane.b32.xlu0 %v999, 88
    %v1073 = vpop.permute.xlu0 %1072
    %v1074 = vsel %vm164, %v1071, 0
    %v1076 = vsel %vm164, %v1073, 0
    %1078 = vmatpush.xpose.msra.mxu0 0.0
    %1079 = vmatpush.xpose.msra.mxu0 0.0
    %1080 = vmatpush.xpose.msra.mxu0 0.0
    %1081 = vmatpush.xpose.msra.mxu0 0.0
    %1082 = vmatpush.xpose.msra.mxu0 0.0
    %1083 = vmatpush.xpose.msra.mxu0 0.0
    %1084 = vmatpush.xpose.msra.mxu0 0.0
    %1085 = vmatpush.xpose.msra.mxu0 0.0
    %1086 = vmatpush.xpose.msra.mxu0 0.0
    %1087 = vmatpush.xpose.msra.mxu0 0.0
    %1088 = vmatpush.xpose.msra.mxu0 0.0
    %1089 = vmatpush.xpose.msra.mxu0 0.0
    %1090 = vmatpush.xpose.msra.mxu0 0.0
    %1091 = vmatpush.xpose.msra.mxu0 0.0
    %1092 = vmatpush.xpose.msra.mxu0 0.0
    %1093 = vmatpush.xpose.msra.mxu0 %v1076
    %1094 = vmatmul.f32.gmra.mxu0 %v1074
    %v1095 = vpop.f32.mrf.mxu0
    %v1096 = vadd.f32 0.0, %v1095
    %1097 = vdwg.mxu0
    %v1098 = vsel %vm164, %v1096, -inf
    %1099 = vmax.xlane.f32.xlu0 %v1098
    %v1100 = vpop.xlane.xlu0 %1099
    %v1101 = vsub.f32 %v1096, %v1100
    %v1102 = vmul.f32 %v1101, 1.442695
    %v1103 = vpow.pop %v1102
    %v1104 = vsel %vm164, %v1103, 0.0
    %1105 = vadd.xlane.f32.xlu0 %v1104
    %v1106 = vpop.xlane.xlu0 %1105
    %v1107 = vrcp.pop %v1106
    %v1108 = vmul.f32 %v1103, %v1107
    %1109 = vrot.lane.b32.xlu0 %v999, 56
    %v1110 = vpop.permute.xlu0 %1109
    %v1113 = vsel %vm164, %v1108, 0
    %1115 = vmatpush.msra.mxu0 0.0
    %1116 = vmatpush.msra.mxu0 0.0
    %1117 = vmatpush.msra.mxu0 0.0
    %1118 = vmatpush.msra.mxu0 0.0
    %1119 = vmatpush.msra.mxu0 0.0
    %1120 = vmatpush.msra.mxu0 0.0
    %1121 = vmatpush.msra.mxu0 0.0
    %1122 = vmatpush.msra.mxu0 0.0
    %1123 = vmatpush.msra.mxu0 0.0
    %1124 = vmatpush.msra.mxu0 0.0
    %1125 = vmatpush.msra.mxu0 0.0
    %1126 = vmatpush.msra.mxu0 0.0
    %1127 = vmatpush.msra.mxu0 0.0
    %1128 = vmatpush.msra.mxu0 0.0
    %1129 = vmatpush.msra.mxu0 0.0
    %1130 = vmatpush.msra.mxu0 %v1110
    %1131 = vmatmul.f32.gmra.mxu0 %v1113
    %v1132 = vpop.f32.mrf.mxu0
    %v1133 = vadd.f32 0.0, %v1132
    %1134 = vdwg.mxu0
    %1135 = vrot.lane.b32.xlu0 %v1004, 112
    %v1136 = vpop.permute.xlu0 %1135
    %1137 = vrot.lane.b32.xlu0 %v999, 80
    %v1138 = vpop.permute.xlu0 %1137
    %v1139 = vsel %vm164, %v1136, 0
    %v1141 = vsel %vm164, %v1138, 0
    %1143 = vmatpush.xpose.msra.mxu0 0.0
    %1144 = vmatpush.xpose.msra.mxu0 0.0
    %1145 = vmatpush.xpose.msra.mxu0 0.0
    %1146 = vmatpush.xpose.msra.mxu0 0.0
    %1147 = vmatpush.xpose.msra.mxu0 0.0
    %1148 = vmatpush.xpose.msra.mxu0 0.0
    %1149 = vmatpush.xpose.msra.mxu0 0.0
    %1150 = vmatpush.xpose.msra.mxu0 0.0
    %1151 = vmatpush.xpose.msra.mxu0 0.0
    %1152 = vmatpush.xpose.msra.mxu0 0.0
    %1153 = vmatpush.xpose.msra.mxu0 0.0
    %1154 = vmatpush.xpose.msra.mxu0 0.0
    %1155 = vmatpush.xpose.msra.mxu0 0.0
    %1156 = vmatpush.xpose.msra.mxu0 0.0
    %1157 = vmatpush.xpose.msra.mxu0 0.0
    %1158 = vmatpush.xpose.msra.mxu0 %v1141
    %1159 = vmatmul.f32.gmra.mxu0 %v1139
    %v1160 = vpop.f32.mrf.mxu0
    %v1161 = vadd.f32 0.0, %v1160
    %1162 = vdwg.mxu0
    %v1163 = vsel %vm164, %v1161, -inf
    %1164 = vmax.xlane.f32.xlu0 %v1163
    %v1165 = vpop.xlane.xlu0 %1164
    %v1166 = vsub.f32 %v1161, %v1165
    %v1167 = vmul.f32 %v1166, 1.442695
    %v1168 = vpow.pop %v1167
    %v1169 = vsel %vm164, %v1168, 0.0
    %1170 = vadd.xlane.f32.xlu0 %v1169
    %v1171 = vpop.xlane.xlu0 %1170
    %v1172 = vrcp.pop %v1171
    %v1173 = vmul.f32 %v1168, %v1172
    %1174 = vrot.lane.b32.xlu0 %v999, 48
    %v1175 = vpop.permute.xlu0 %1174
    %v1178 = vsel %vm164, %v1173, 0
    %1180 = vmatpush.msra.mxu0 0.0
    %1181 = vmatpush.msra.mxu0 0.0
    %1182 = vmatpush.msra.mxu0 0.0
    %1183 = vmatpush.msra.mxu0 0.0
    %1184 = vmatpush.msra.mxu0 0.0
    %1185 = vmatpush.msra.mxu0 0.0
    %1186 = vmatpush.msra.mxu0 0.0
    %1187 = vmatpush.msra.mxu0 0.0
    %1188 = vmatpush.msra.mxu0 0.0
    %1189 = vmatpush.msra.mxu0 0.0
    %1190 = vmatpush.msra.mxu0 0.0
    %1191 = vmatpush.msra.mxu0 0.0
    %1192 = vmatpush.msra.mxu0 0.0
    %1193 = vmatpush.msra.mxu0 0.0
    %1194 = vmatpush.msra.mxu0 0.0
    %1195 = vmatpush.msra.mxu0 %v1175
    %1196 = vmatmul.f32.gmra.mxu0 %v1178
    %v1197 = vpop.f32.mrf.mxu0
    %v1198 = vadd.f32 0.0, %v1197
    %1199 = vdwg.mxu0
    %1200 = vrot.lane.b32.xlu0 %v1004, 104
    %v1201 = vpop.permute.xlu0 %1200
    %1202 = vrot.lane.b32.xlu0 %v999, 72
    %v1203 = vpop.permute.xlu0 %1202
    %v1204 = vsel %vm164, %v1201, 0
    %v1206 = vsel %vm164, %v1203, 0
    %1208 = vmatpush.xpose.msra.mxu0 0.0
    %1209 = vmatpush.xpose.msra.mxu0 0.0
    %1210 = vmatpush.xpose.msra.mxu0 0.0
    %1211 = vmatpush.xpose.msra.mxu0 0.0
    %1212 = vmatpush.xpose.msra.mxu0 0.0
    %1213 = vmatpush.xpose.msra.mxu0 0.0
    %1214 = vmatpush.xpose.msra.mxu0 0.0
    %1215 = vmatpush.xpose.msra.mxu0 0.0
    %1216 = vmatpush.xpose.msra.mxu0 0.0
    %1217 = vmatpush.xpose.msra.mxu0 0.0
    %1218 = vmatpush.xpose.msra.mxu0 0.0
    %1219 = vmatpush.xpose.msra.mxu0 0.0
    %1220 = vmatpush.xpose.msra.mxu0 0.0
    %1221 = vmatpush.xpose.msra.mxu0 0.0
    %1222 = vmatpush.xpose.msra.mxu0 0.0
    %1223 = vmatpush.xpose.msra.mxu0 %v1206
    %1224 = vmatmul.f32.gmra.mxu0 %v1204
    %v1225 = vpop.f32.mrf.mxu0
    %v1226 = vadd.f32 0.0, %v1225
    %1227 = vdwg.mxu0
    %v1228 = vsel %vm164, %v1226, -inf
    %1229 = vmax.xlane.f32.xlu0 %v1228
    %v1230 = vpop.xlane.xlu0 %1229
    %v1231 = vsub.f32 %v1226, %v1230
    %v1232 = vmul.f32 %v1231, 1.442695
    %v1233 = vpow.pop %v1232
    %v1234 = vsel %vm164, %v1233, 0.0
    %1235 = vadd.xlane.f32.xlu0 %v1234
    %v1236 = vpop.xlane.xlu0 %1235
    %v1237 = vrcp.pop %v1236
    %v1238 = vmul.f32 %v1233, %v1237
    %1239 = vrot.lane.b32.xlu0 %v999, 40
    %v1240 = vpop.permute.xlu0 %1239
    %v1243 = vsel %vm164, %v1238, 0
    %1245 = vmatpush.msra.mxu0 0.0
    %1246 = vmatpush.msra.mxu0 0.0
    %1247 = vmatpush.msra.mxu0 0.0
    %1248 = vmatpush.msra.mxu0 0.0
    %1249 = vmatpush.msra.mxu0 0.0
    %1250 = vmatpush.msra.mxu0 0.0
    %1251 = vmatpush.msra.mxu0 0.0
    %1252 = vmatpush.msra.mxu0 0.0
    %1253 = vmatpush.msra.mxu0 0.0
    %1254 = vmatpush.msra.mxu0 0.0
    %1255 = vmatpush.msra.mxu0 0.0
    %1256 = vmatpush.msra.mxu0 0.0
    %1257 = vmatpush.msra.mxu0 0.0
    %1258 = vmatpush.msra.mxu0 0.0
    %1259 = vmatpush.msra.mxu0 0.0
    %1260 = vmatpush.msra.mxu0 %v1240
    %1261 = vmatmul.f32.gmra.mxu0 %v1243
    %v1262 = vpop.f32.mrf.mxu0
    %v1263 = vadd.f32 0.0, %v1262
    %1264 = vdwg.mxu0
    %1266 = vrot.lane.b32.xlu0 %v1133, 8
    %v1267 = vpop.permute.xlu0 %1266
    %1270 = vrot.lane.b32.xlu0 %v1198, 16
    %v1271 = vpop.permute.xlu0 %1270
    %1274 = vrot.lane.b32.xlu0 %v1263, 24
    %v1275 = vpop.permute.xlu0 %1274
    %v1277 = vsel %vm164, %v1068, %v1267
    %v1278 = vsel %vm435, %v1277, %v1271
    %v1279 = vsel %vm437, %v1278, %v1275
    %v1280 = vmul.f32 %v1002, 0.35355338
    %1282 = vrot.lane.b32.xlu0 %v1002, 96
    %v1283 = vpop.permute.xlu0 %1282
    %v1285 = vsel %vm164, %v1280, 0
    %v1287 = vsel %vm164, %v1283, 0
    %1289 = vmatpush.xpose.msra.mxu0 0.0
    %1290 = vmatpush.xpose.msra.mxu0 0.0
    %1291 = vmatpush.xpose.msra.mxu0 0.0
    %1292 = vmatpush.xpose.msra.mxu0 0.0
    %1293 = vmatpush.xpose.msra.mxu0 0.0
    %1294 = vmatpush.xpose.msra.mxu0 0.0
    %1295 = vmatpush.xpose.msra.mxu0 0.0
    %1296 = vmatpush.xpose.msra.mxu0 0.0
    %1297 = vmatpush.xpose.msra.mxu0 0.0
    %1298 = vmatpush.xpose.msra.mxu0 0.0
    %1299 = vmatpush.xpose.msra.mxu0 0.0
    %1300 = vmatpush.xpose.msra.mxu0 0.0
    %1301 = vmatpush.xpose.msra.mxu0 0.0
    %1302 = vmatpush.xpose.msra.mxu0 0.0
    %1303 = vmatpush.xpose.msra.mxu0 0.0
    %1304 = vmatpush.xpose.msra.mxu0 %v1287
    %1305 = vmatmul.f32.gmra.mxu0 %v1285
    %v1306 = vpop.f32.mrf.mxu0
    %v1307 = vadd.f32 0.0, %v1306
    %1308 = vdwg.mxu0
    %v1309 = vsel %vm164, %v1307, -inf
    %1310 = vmax.xlane.f32.xlu0 %v1309
    %v1311 = vpop.xlane.xlu0 %1310
    %v1312 = vsub.f32 %v1307, %v1311
    %v1313 = vmul.f32 %v1312, 1.442695
    %v1314 = vpow.pop %v1313
    %v1315 = vsel %vm164, %v1314, 0.0
    %1316 = vadd.xlane.f32.xlu0 %v1315
    %v1317 = vpop.xlane.xlu0 %1316
    %v1318 = vrcp.pop %v1317
    %v1319 = vmul.f32 %v1314, %v1318
    %1320 = vrot.lane.b32.xlu0 %v1002, 64
    %v1321 = vpop.permute.xlu0 %1320
    %v1324 = vsel %vm164, %v1319, 0
    %1326 = vmatpush.msra.mxu0 0.0
    %1327 = vmatpush.msra.mxu0 0.0
    %1328 = vmatpush.msra.mxu0 0.0
    %1329 = vmatpush.msra.mxu0 0.0
    %1330 = vmatpush.msra.mxu0 0.0
    %1331 = vmatpush.msra.mxu0 0.0
    %1332 = vmatpush.msra.mxu0 0.0
    %1333 = vmatpush.msra.mxu0 0.0
    %1334 = vmatpush.msra.mxu0 0.0
    %1335 = vmatpush.msra.mxu0 0.0
    %1336 = vmatpush.msra.mxu0 0.0
    %1337 = vmatpush.msra.mxu0 0.0
    %1338 = vmatpush.msra.mxu0 0.0
    %1339 = vmatpush.msra.mxu0 0.0
    %1340 = vmatpush.msra.mxu0 0.0
    %1341 = vmatpush.msra.mxu0 %v1321
    %1342 = vmatmul.f32.gmra.mxu0 %v1324
    %v1343 = vpop.f32.mrf.mxu0
    %v1344 = vadd.f32 0.0, %v1343
    %1345 = vdwg.mxu0
    %1346 = vrot.lane.b32.xlu0 %v1280, 120
    %v1347 = vpop.permute.xlu0 %1346
    %1348 = vrot.lane.b32.xlu0 %v1002, 88
    %v1349 = vpop.permute.xlu0 %1348
    %v1350 = vsel %vm164, %v1347, 0
    %v1352 = vsel %vm164, %v1349, 0
    %1354 = vmatpush.xpose.msra.mxu0 0.0
    %1355 = vmatpush.xpose.msra.mxu0 0.0
    %1356 = vmatpush.xpose.msra.mxu0 0.0
    %1357 = vmatpush.xpose.msra.mxu0 0.0
    %1358 = vmatpush.xpose.msra.mxu0 0.0
    %1359 = vmatpush.xpose.msra.mxu0 0.0
    %1360 = vmatpush.xpose.msra.mxu0 0.0
    %1361 = vmatpush.xpose.msra.mxu0 0.0
    %1362 = vmatpush.xpose.msra.mxu0 0.0
    %1363 = vmatpush.xpose.msra.mxu0 0.0
    %1364 = vmatpush.xpose.msra.mxu0 0.0
    %1365 = vmatpush.xpose.msra.mxu0 0.0
    %1366 = vmatpush.xpose.msra.mxu0 0.0
    %1367 = vmatpush.xpose.msra.mxu0 0.0
    %1368 = vmatpush.xpose.msra.mxu0 0.0
    %1369 = vmatpush.xpose.msra.mxu0 %v1352
    %1370 = vmatmul.f32.gmra.mxu0 %v1350
    %v1371 = vpop.f32.mrf.mxu0
    %v1372 = vadd.f32 0.0, %v1371
    %1373 = vdwg.mxu0
    %v1374 = vsel %vm164, %v1372, -inf
    %1375 = vmax.xlane.f32.xlu0 %v1374
    %v1376 = vpop.xlane.xlu0 %1375
    %v1377 = vsub.f32 %v1372, %v1376
    %v1378 = vmul.f32 %v1377, 1.442695
    %v1379 = vpow.pop %v1378
    %v1380 = vsel %vm164, %v1379, 0.0
    %1381 = vadd.xlane.f32.xlu0 %v1380
    %v1382 = vpop.xlane.xlu0 %1381
    %v1383 = vrcp.pop %v1382
    %v1384 = vmul.f32 %v1379, %v1383
    %1385 = vrot.lane.b32.xlu0 %v1002, 56
    %v1386 = vpop.permute.xlu0 %1385
    %v1389 = vsel %vm164, %v1384, 0
    %1391 = vmatpush.msra.mxu0 0.0
    %1392 = vmatpush.msra.mxu0 0.0
    %1393 = vmatpush.msra.mxu0 0.0
    %1394 = vmatpush.msra.mxu0 0.0
    %1395 = vmatpush.msra.mxu0 0.0
    %1396 = vmatpush.msra.mxu0 0.0
    %1397 = vmatpush.msra.mxu0 0.0
    %1398 = vmatpush.msra.mxu0 0.0
    %1399 = vmatpush.msra.mxu0 0.0
    %1400 = vmatpush.msra.mxu0 0.0
    %1401 = vmatpush.msra.mxu0 0.0
    %1402 = vmatpush.msra.mxu0 0.0
    %1403 = vmatpush.msra.mxu0 0.0
    %1404 = vmatpush.msra.mxu0 0.0
    %1405 = vmatpush.msra.mxu0 0.0
    %1406 = vmatpush.msra.mxu0 %v1386
    %1407 = vmatmul.f32.gmra.mxu0 %v1389
    %v1408 = vpop.f32.mrf.mxu0
    %v1409 = vadd.f32 0.0, %v1408
    %1410 = vdwg.mxu0
    %1411 = vrot.lane.b32.xlu0 %v1280, 112
    %v1412 = vpop.permute.xlu0 %1411
    %1413 = vrot.lane.b32.xlu0 %v1002, 80
    %v1414 = vpop.permute.xlu0 %1413
    %v1415 = vsel %vm164, %v1412, 0
    %v1417 = vsel %vm164, %v1414, 0
    %1419 = vmatpush.xpose.msra.mxu0 0.0
    %1420 = vmatpush.xpose.msra.mxu0 0.0
    %1421 = vmatpush.xpose.msra.mxu0 0.0
    %1422 = vmatpush.xpose.msra.mxu0 0.0
    %1423 = vmatpush.xpose.msra.mxu0 0.0
    %1424 = vmatpush.xpose.msra.mxu0 0.0
    %1425 = vmatpush.xpose.msra.mxu0 0.0
    %1426 = vmatpush.xpose.msra.mxu0 0.0
    %1427 = vmatpush.xpose.msra.mxu0 0.0
    %1428 = vmatpush.xpose.msra.mxu0 0.0
    %1429 = vmatpush.xpose.msra.mxu0 0.0
    %1430 = vmatpush.xpose.msra.mxu0 0.0
    %1431 = vmatpush.xpose.msra.mxu0 0.0
    %1432 = vmatpush.xpose.msra.mxu0 0.0
    %1433 = vmatpush.xpose.msra.mxu0 0.0
    %1434 = vmatpush.xpose.msra.mxu0 %v1417
    %1435 = vmatmul.f32.gmra.mxu0 %v1415
    %v1436 = vpop.f32.mrf.mxu0
    %v1437 = vadd.f32 0.0, %v1436
    %1438 = vdwg.mxu0
    %v1439 = vsel %vm164, %v1437, -inf
    %1440 = vmax.xlane.f32.xlu0 %v1439
    %v1441 = vpop.xlane.xlu0 %1440
    %v1442 = vsub.f32 %v1437, %v1441
    %v1443 = vmul.f32 %v1442, 1.442695
    %v1444 = vpow.pop %v1443
    %v1445 = vsel %vm164, %v1444, 0.0
    %1446 = vadd.xlane.f32.xlu0 %v1445
    %v1447 = vpop.xlane.xlu0 %1446
    %v1448 = vrcp.pop %v1447
    %v1449 = vmul.f32 %v1444, %v1448
    %1450 = vrot.lane.b32.xlu0 %v1002, 48
    %v1451 = vpop.permute.xlu0 %1450
    %v1454 = vsel %vm164, %v1449, 0
    %1456 = vmatpush.msra.mxu0 0.0
    %1457 = vmatpush.msra.mxu0 0.0
    %1458 = vmatpush.msra.mxu0 0.0
    %1459 = vmatpush.msra.mxu0 0.0
    %1460 = vmatpush.msra.mxu0 0.0
    %1461 = vmatpush.msra.mxu0 0.0
    %1462 = vmatpush.msra.mxu0 0.0
    %1463 = vmatpush.msra.mxu0 0.0
    %1464 = vmatpush.msra.mxu0 0.0
    %1465 = vmatpush.msra.mxu0 0.0
    %1466 = vmatpush.msra.mxu0 0.0
    %1467 = vmatpush.msra.mxu0 0.0
    %1468 = vmatpush.msra.mxu0 0.0
    %1469 = vmatpush.msra.mxu0 0.0
    %1470 = vmatpush.msra.mxu0 0.0
    %1471 = vmatpush.msra.mxu0 %v1451
    %1472 = vmatmul.f32.gmra.mxu0 %v1454
    %v1473 = vpop.f32.mrf.mxu0
    %v1474 = vadd.f32 0.0, %v1473
    %1475 = vdwg.mxu0
    %1476 = vrot.lane.b32.xlu0 %v1280, 104
    %v1477 = vpop.permute.xlu0 %1476
    %1478 = vrot.lane.b32.xlu0 %v1002, 72
    %v1479 = vpop.permute.xlu0 %1478
    %v1480 = vsel %vm164, %v1477, 0
    %v1482 = vsel %vm164, %v1479, 0
    %1484 = vmatpush.xpose.msra.mxu0 0.0
    %1485 = vmatpush.xpose.msra.mxu0 0.0
    %1486 = vmatpush.xpose.msra.mxu0 0.0
    %1487 = vmatpush.xpose.msra.mxu0 0.0
    %1488 = vmatpush.xpose.msra.mxu0 0.0
    %1489 = vmatpush.xpose.msra.mxu0 0.0
    %1490 = vmatpush.xpose.msra.mxu0 0.0
    %1491 = vmatpush.xpose.msra.mxu0 0.0
    %1492 = vmatpush.xpose.msra.mxu0 0.0
    %1493 = vmatpush.xpose.msra.mxu0 0.0
    %1494 = vmatpush.xpose.msra.mxu0 0.0
    %1495 = vmatpush.xpose.msra.mxu0 0.0
    %1496 = vmatpush.xpose.msra.mxu0 0.0
    %1497 = vmatpush.xpose.msra.mxu0 0.0
    %1498 = vmatpush.xpose.msra.mxu0 0.0
    %1499 = vmatpush.xpose.msra.mxu0 %v1482
    %1500 = vmatmul.f32.gmra.mxu0 %v1480
    %v1501 = vpop.f32.mrf.mxu0
    %v1502 = vadd.f32 0.0, %v1501
    %1503 = vdwg.mxu0
    %v1504 = vsel %vm164, %v1502, -inf
    %1505 = vmax.xlane.f32.xlu0 %v1504
    %v1506 = vpop.xlane.xlu0 %1505
    %v1507 = vsub.f32 %v1502, %v1506
    %v1508 = vmul.f32 %v1507, 1.442695
    %v1509 = vpow.pop %v1508
    %v1510 = vsel %vm164, %v1509, 0.0
    %1511 = vadd.xlane.f32.xlu0 %v1510
    %v1512 = vpop.xlane.xlu0 %1511
    %v1513 = vrcp.pop %v1512
    %v1514 = vmul.f32 %v1509, %v1513
    %1515 = vrot.lane.b32.xlu0 %v1002, 40
    %v1516 = vpop.permute.xlu0 %1515
    %v1519 = vsel %vm164, %v1514, 0
    %1521 = vmatpush.msra.mxu0 0.0
    %1522 = vmatpush.msra.mxu0 0.0
    %1523 = vmatpush.msra.mxu0 0.0
    %1524 = vmatpush.msra.mxu0 0.0
    %1525 = vmatpush.msra.mxu0 0.0
    %1526 = vmatpush.msra.mxu0 0.0
    %1527 = vmatpush.msra.mxu0 0.0
    %1528 = vmatpush.msra.mxu0 0.0
    %1529 = vmatpush.msra.mxu0 0.0
    %1530 = vmatpush.msra.mxu0 0.0
    %1531 = vmatpush.msra.mxu0 0.0
    %1532 = vmatpush.msra.mxu0 0.0
    %1533 = vmatpush.msra.mxu0 0.0
    %1534 = vmatpush.msra.mxu0 0.0
    %1535 = vmatpush.msra.mxu0 0.0
    %1536 = vmatpush.msra.mxu0 %v1516
    %1537 = vmatmul.f32.gmra.mxu0 %v1519
    %v1538 = vpop.f32.mrf.mxu0
    %v1539 = vadd.f32 0.0, %v1538
    %1540 = vdwg.mxu0
    %1542 = vrot.lane.b32.xlu0 %v1409, 8
    %v1543 = vpop.permute.xlu0 %1542
    %1546 = vrot.lane.b32.xlu0 %v1474, 16
    %v1547 = vpop.permute.xlu0 %1546
    %1550 = vrot.lane.b32.xlu0 %v1539, 24
    %v1551 = vpop.permute.xlu0 %1550
    %v1553 = vsel %vm164, %v1344, %v1543
    %v1554 = vsel %vm435, %v1553, %v1547
    %v1555 = vsel %vm437, %v1554, %v1551
    %s1556 = scalar_lea.vmem %s5, 32
    %v1557 = vld [vmem:[%s1556] sm:$0xff]
    %v1558 = vld [vmem:[%s1556 + $0x8] sm:$0xff]
    %v1559 = vld [vmem:[%s1556 + $0x10] sm:$0xff]
    %v1560 = vld [vmem:[%s1556 + $0x18] sm:$0xff]
    %s1561 = scalar_lea.vmem %s6, 1
    %v1562 = vld [vmem:[%s1561] sm:$0x1]
    %v1564 = vperm.slane %v1562, 0
    %v1567 = vsel %vm61, %v1279, 0
    %v1570 = vsel %vm61, %v1555, 0
    %1572 = vmatpush.msra.mxu0 0.0
    %1573 = vmatpush.msra.mxu0 0.0
    %1574 = vmatpush.msra.mxu0 0.0
    %1575 = vmatpush.msra.mxu0 0.0
    %1576 = vmatpush.msra.mxu0 0.0
    %1577 = vmatpush.msra.mxu0 0.0
    %1578 = vmatpush.msra.mxu0 0.0
    %1579 = vmatpush.msra.mxu0 0.0
    %1580 = vmatpush.msra.mxu0 0.0
    %1581 = vmatpush.msra.mxu0 0.0
    %1582 = vmatpush.msra.mxu0 0.0
    %1583 = vmatpush.msra.mxu0 0.0
    %1584 = vmatpush.msra.mxu0 %v1560
    %1585 = vmatpush.msra.mxu0 %v1559
    %1586 = vmatpush.msra.mxu0 %v1558
    %1587 = vmatpush.msra.mxu0 %v1557
    %1588 = vmatmul.f32.gmra.mxu0 %v1567
    %v1589 = vpop.f32.mrf.mxu0
    %v1590 = vadd.f32 %v1564, %v1589
    %1591 = vmatmul.f32.gmra.mxu0 %v1570
    %v1592 = vpop.f32.mrf.mxu0
    %v1593 = vadd.f32 %v1564, %v1592
    %1594 = vdwg.mxu0
    %v1595 = vadd.f32 %v963, %v1590
    %v1596 = vadd.f32 %v964, %v1593
    %s1597 = scalar_lea.vmem %s7, 1
    %v1598 = vld [vmem:[%s1597] sm:$0x1]
    %s1599 = scalar_lea.vmem %s8, 1
    %v1600 = vld [vmem:[%s1599] sm:$0x1]
    %v1601 = vsel %vm61, %v1595, 0.0
    %1602 = vadd.xlane.f32.xlu0 %v1601
    %v1603 = vpop.xlane.xlu0 %1602
    %v1604 = vsel %vm61, %v1596, 0.0
    %1605 = vadd.xlane.f32.xlu0 %v1604
    %v1606 = vpop.xlane.xlu0 %1605
    %v1607 = vmul.f32 %v1603, %v74
    %v1608 = vmul.f32 %v1606, %v74
    %v1609 = vsub.f32 %v1595, %v1607
    %v1610 = vsub.f32 %v1596, %v1608
    %v1611 = vmul.f32 %v1609, %v1609
    %v1612 = vmul.f32 %v1610, %v1610
    %v1613 = vsel %vm61, %v1611, 0.0
    %1614 = vadd.xlane.f32.xlu0 %v1613
    %v1615 = vpop.xlane.xlu0 %1614
    %v1616 = vsel %vm61, %v1612, 0.0
    %1617 = vadd.xlane.f32.xlu0 %v1616
    %v1618 = vpop.xlane.xlu0 %1617
    %v1619 = vmul.f32 %v1615, %v74
    %v1620 = vmul.f32 %v1618, %v74
    %v1621 = vadd.f32 %v1619, 1e-12
    %v1622 = vadd.f32 %v1620, 1e-12
    %v1623 = vrsqrt.pop %v1621
    %v1624 = vmul.f32 %v1623, %v1621
    %v1625 = vmul.f32 %v1624, %v1623
    %v1626 = vmul.f32 0.5, %v1625
    %v1627 = vsub.f32 1.5, %v1626
    %v1628 = vmul.f32 %v1623, %v1627
    %vm1629 = vweird.f32 %v1621
    %vm1630 = vweird.f32 %v1623
    %vm1631 = vmor %vm1629, %vm1630
    %v1632 = vsel %vm1631, %v1623, %v1628
    %v1633 = vrsqrt.pop %v1622
    %v1634 = vmul.f32 %v1633, %v1622
    %v1635 = vmul.f32 %v1634, %v1633
    %v1636 = vmul.f32 0.5, %v1635
    %v1637 = vsub.f32 1.5, %v1636
    %v1638 = vmul.f32 %v1633, %v1637
    %vm1639 = vweird.f32 %v1622
    %vm1640 = vweird.f32 %v1633
    %vm1641 = vmor %vm1639, %vm1640
    %v1642 = vsel %vm1641, %v1633, %v1638
    %v1643 = vmul.f32 %v1609, %v1632
    %v1644 = vmul.f32 %v1610, %v1642
    %v1646 = vperm.slane %v1598, 0
    %v1648 = vmul.f32 %v1643, %v1646
    %v1649 = vmul.f32 %v1644, %v1646
    %v1651 = vperm.slane %v1600, 0
    %v1653 = vadd.f32 %v1648, %v1651
    %v1654 = vadd.f32 %v1649, %v1651
    %s1655 = scalar_lea.vmem %s9, 32
    %v1656 = vld [vmem:[%s1655] sm:$0xff]
    %v1657 = vld [vmem:[%s1655 + $0x8] sm:$0xff]
    %v1658 = vld [vmem:[%s1655 + $0x10] sm:$0xff]
    %v1659 = vld [vmem:[%s1655 + $0x18] sm:$0xff]
    %s1660 = scalar_lea.vmem %s10, 1
    %v1661 = vld [vmem:[%s1660] sm:$0x1]
    %v1663 = vperm.slane %v1661, 0
    %v1666 = vsel %vm61, %v1653, 0
    %v1669 = vsel %vm61, %v1654, 0
    %1671 = vmatpush.msra.mxu0 0.0
    %1672 = vmatpush.msra.mxu0 0.0
    %1673 = vmatpush.msra.mxu0 0.0
    %1674 = vmatpush.msra.mxu0 0.0
    %1675 = vmatpush.msra.mxu0 0.0
    %1676 = vmatpush.msra.mxu0 0.0
    %1677 = vmatpush.msra.mxu0 0.0
    %1678 = vmatpush.msra.mxu0 0.0
    %1679 = vmatpush.msra.mxu0 0.0
    %1680 = vmatpush.msra.mxu0 0.0
    %1681 = vmatpush.msra.mxu0 0.0
    %1682 = vmatpush.msra.mxu0 0.0
    %1683 = vmatpush.msra.mxu0 %v1659
    %1684 = vmatpush.msra.mxu0 %v1658
    %1685 = vmatpush.msra.mxu0 %v1657
    %1686 = vmatpush.msra.mxu0 %v1656
    %1687 = vmatmul.f32.gmra.mxu0 %v1666
    %v1688 = vpop.f32.mrf.mxu0
    %v1689 = vadd.f32 %v1663, %v1688
    %1690 = vmatmul.f32.gmra.mxu0 %v1669
    %v1691 = vpop.f32.mrf.mxu0
    %v1692 = vadd.f32 %v1663, %v1691
    %1693 = vdwg.mxu0
    %v1694 = vmul.f32 %v1689, %v1689
    %v1695 = vmul.f32 %v1692, %v1692
    %v1696 = vmul.f32 %v1689, %v1694
    %v1697 = vmul.f32 %v1692, %v1695
    %v1698 = vmul.f32 %v1696, 0.044715
    %v1699 = vmul.f32 %v1697, 0.044715
    %v1700 = vadd.f32 %v1689, %v1698
    %v1701 = vadd.f32 %v1692, %v1699
    %v1702 = vmul.f32 %v1700, 0.7978846
    %v1703 = vmul.f32 %v1701, 0.7978846
    %v1704 = vtanh.pop %v1702
    %v1705 = vtanh.pop %v1703
    %v1706 = vadd.f32 %v1704, 1.0
    %v1707 = vadd.f32 %v1705, 1.0
    %v1708 = vmul.f32 %v1706, 0.5
    %v1709 = vmul.f32 %v1707, 0.5
    %v1710 = vmul.f32 %v1689, %v1708
    %v1711 = vmul.f32 %v1692, %v1709
    %s1712 = scalar_lea.vmem %s11, 64
    %v1713 = vld [vmem:[%s1712] sm:$0xff]
    %v1714 = vld [vmem:[%s1712 + $0x8] sm:$0xff]
    %v1715 = vld [vmem:[%s1712 + $0x10] sm:$0xff]
    %v1716 = vld [vmem:[%s1712 + $0x18] sm:$0xff]
    %v1717 = vld [vmem:[%s1712 + $0x20] sm:$0xff]
    %v1718 = vld [vmem:[%s1712 + $0x28] sm:$0xff]
    %v1719 = vld [vmem:[%s1712 + $0x30] sm:$0xff]
    %v1720 = vld [vmem:[%s1712 + $0x38] sm:$0xff]
    %s1721 = scalar_lea.vmem %s12, 1
    %v1722 = vld [vmem:[%s1721] sm:$0x1]
    %v1724 = vperm.slane %v1722, 0
    %v1727 = vsel %vm877, %v1710, 0
    %v1730 = vsel %vm877, %v1711, 0
    %1732 = vmatpush.msra.mxu0 0.0
    %1733 = vmatpush.msra.mxu0 0.0
    %1734 = vmatpush.msra.mxu0 0.0
    %1735 = vmatpush.msra.mxu0 0.0
    %1736 = vmatpush.msra.mxu0 0.0
    %1737 = vmatpush.msra.mxu0 0.0
    %1738 = vmatpush.msra.mxu0 0.0
    %1739 = vmatpush.msra.mxu0 0.0
    %1740 = vmatpush.msra.mxu0 %v1720
    %1741 = vmatpush.msra.mxu0 %v1719
    %1742 = vmatpush.msra.mxu0 %v1718
    %1743 = vmatpush.msra.mxu0 %v1717
    %1744 = vmatpush.msra.mxu0 %v1716
    %1745 = vmatpush.msra.mxu0 %v1715
    %1746 = vmatpush.msra.mxu0 %v1714
    %1747 = vmatpush.msra.mxu0 %v1713
    %1748 = vmatmul.f32.gmra.mxu0 %v1727
    %v1749 = vpop.f32.mrf.mxu0
    %v1750 = vadd.f32 %v1724, %v1749
    %1751 = vmatmul.f32.gmra.mxu0 %v1730
    %v1752 = vpop.f32.mrf.mxu0
    %v1753 = vadd.f32 %v1724, %v1752
    %1754 = vdwg.mxu0
    %v1755 = vadd.f32 %v1653, %v1750
    %v1756 = vadd.f32 %v1654, %v1753
    %s1757 = scalar_lea.vmem %s13, 1
    %v1758 = vld [vmem:[%s1757] sm:$0x1]
    %s1759 = scalar_lea.vmem %s14, 1
    %v1760 = vld [vmem:[%s1759] sm:$0x1]
    %v1761 = vsel %vm61, %v1755, 0.0
    %1762 = vadd.xlane.f32.xlu0 %v1761
    %v1763 = vpop.xlane.xlu0 %1762
    %v1764 = vsel %vm61, %v1756, 0.0
    %1765 = vadd.xlane.f32.xlu0 %v1764
    %v1766 = vpop.xlane.xlu0 %1765
    %v1767 = vmul.f32 %v1763, %v74
    %v1768 = vmul.f32 %v1766, %v74
    %v1769 = vsub.f32 %v1755, %v1767
    %v1770 = vsub.f32 %v1756, %v1768
    %v1771 = vmul.f32 %v1769, %v1769
    %v1772 = vmul.f32 %v1770, %v1770
    %v1773 = vsel %vm61, %v1771, 0.0
    %1774 = vadd.xlane.f32.xlu0 %v1773
    %v1775 = vpop.xlane.xlu0 %1774
    %v1776 = vsel %vm61, %v1772, 0.0
    %1777 = vadd.xlane.f32.xlu0 %v1776
    %v1778 = vpop.xlane.xlu0 %1777
    %v1779 = vmul.f32 %v1775, %v74
    %v1780 = vmul.f32 %v1778, %v74
    %v1781 = vadd.f32 %v1779, 1e-12
    %v1782 = vadd.f32 %v1780, 1e-12
    %v1783 = vrsqrt.pop %v1781
    %v1784 = vmul.f32 %v1783, %v1781
    %v1785 = vmul.f32 %v1784, %v1783
    %v1786 = vmul.f32 0.5, %v1785
    %v1787 = vsub.f32 1.5, %v1786
    %v1788 = vmul.f32 %v1783, %v1787
    %vm1789 = vweird.f32 %v1781
    %vm1790 = vweird.f32 %v1783
    %vm1791 = vmor %vm1789, %vm1790
    %v1792 = vsel %vm1791, %v1783, %v1788
    %v1793 = vrsqrt.pop %v1782
    %v1794 = vmul.f32 %v1793, %v1782
    %v1795 = vmul.f32 %v1794, %v1793
    %v1796 = vmul.f32 0.5, %v1795
    %v1797 = vsub.f32 1.5, %v1796
    %v1798 = vmul.f32 %v1793, %v1797
    %vm1799 = vweird.f32 %v1782
    %vm1800 = vweird.f32 %v1793
    %vm1801 = vmor %vm1799, %vm1800
    %v1802 = vsel %vm1801, %v1793, %v1798
    %v1803 = vmul.f32 %v1769, %v1792
    %v1804 = vmul.f32 %v1770, %v1802
    %v1806 = vperm.slane %v1758, 0
    %v1808 = vmul.f32 %v1803, %v1806
    %v1809 = vmul.f32 %v1804, %v1806
    %v1811 = vperm.slane %v1760, 0
    %v1813 = vadd.f32 %v1808, %v1811
    %v1814 = vadd.f32 %v1809, %v1811
    %v1816 = vrot.slane %v1814, 7
    %vm1818 = vcmask 1040384
    %v1819 = vsel %vm1818, %v1813, %v1816
    %v1820 = vtanh.pop %v1819
    %v1821 = vld [vmem:[%s15] sm:$0xff]
    %v1822 = vld [vmem:[%s15 + $0x8] sm:$0xff]
    %v1823 = vld [vmem:[%s15 + $0x10] sm:$0xff]
    %v1824 = vld [vmem:[%s15 + $0x18] sm:$0xff]
    %v1825 = vld [vmem:[%s16] sm:$0x1]
    %v1827 = vperm.slane %v1825, 0
    %v1830 = vsel %vm61, %v1820, 0
    %1832 = vmatpush.msra.mxu0 0.0
    %1833 = vmatpush.msra.mxu0 0.0
    %1834 = vmatpush.msra.mxu0 0.0
    %1835 = vmatpush.msra.mxu0 0.0
    %1836 = vmatpush.msra.mxu0 0.0
    %1837 = vmatpush.msra.mxu0 0.0
    %1838 = vmatpush.msra.mxu0 0.0
    %1839 = vmatpush.msra.mxu0 0.0
    %1840 = vmatpush.msra.mxu0 0.0
    %1841 = vmatpush.msra.mxu0 0.0
    %1842 = vmatpush.msra.mxu0 0.0
    %1843 = vmatpush.msra.mxu0 0.0
    %1844 = vmatpush.msra.mxu0 %v1824
    %1845 = vmatpush.msra.mxu0 %v1823
    %1846 = vmatpush.msra.mxu0 %v1822
    %1847 = vmatpush.msra.mxu0 %v1821
    %1848 = vmatmul.f32.gmra.mxu0 %v1830
    %v1849 = vpop.f32.mrf.mxu0
    %v1850 = vadd.f32 %v1827, %v1849
    %1851 = vdwg.mxu0
    %1852 = vst [vmem:[#allocation2] sm:$0x3] %v1850
    // Predicated region
    $region70: #{transformer_forward.1} parent=1 // pred_check
      _
    $region71: #{transformer_forward.1} parent=1 // pred_check_branch
      %1854 = sbr.rel (0) target = $region73
    $region72: #{transformer_forward.1} parent=1 // pred_region
      %1856 = vsyncadd [#allocation3], 0
      %s1858 = sshll.u32 [#allocation2], 4
      %s1859 = int_to_ptr.vmem [resolvable:$true] %s1858
      %s1860 = sshll.u32 %s17, 4
      %s1861 = int_to_ptr.hbm [resolvable:$true] %s1860
      %1863 = dma.vmem_to_hbm [thread:$0]  %s1859, 32, %s1861, [#allocation3]
    $region73: #{transformer_forward.1} parent=1 // pred_fallthru
      _
    // Predicated region
    $region74: #{transformer_forward.1} parent=1 // pred_check
      _
    $region75: #{transformer_forward.1} parent=1 // pred_check_branch
      %1865 = sbr.rel (0) target = $region77
    $region76: #{transformer_forward.1} parent=1 // pred_region
      %1867 = dma.done [#allocation3], 32
    $region77: #{transformer_forward.1} parent=1 // pred_fallthru
      _
    %1868 = vsyncpa [#allocation3], 1

</llo_original>
